<compile_context>
chip_gen: v7x
topology: tpu7x:2x2x1
jax: 0.10.0
libtpu: 0.0.40
codegen_flags: <defaults>
</compile_context>

<pallas_src>
import functools

import jax
import jax.numpy as jnp
from jax.experimental import pallas as pl
from jax.experimental.pallas import tpu as pltpu

INPUT_SIZE = 28
HIDDEN = 128
OUT = 10
PAD_OUT = 128          # lane-dense padded FC output width
TAU = 2.0              # spikingjelly LIFNode default tau
V_TH = 0.1             # v_threshold passed to the module
# LIF with fresh state v0=0, hard reset v_reset=0, decay_input=True (defaults):
#   v = v0 + (x - (v0 - v_reset)) / tau = x / tau ;  spike = heaviside(v - v_th)


def hybrid_lstm_kernel(xp_ref, w_hh_ref, w_fc_ref, b_fc_ref, out_ref):
    """xp_ref:  (T, TB, 4H)  bf16  precomputed x @ W_ih^T + b (time-major, gates [i,f,o,g])
       w_hh_ref:(H, 4H)      bf16  recurrent weight (gates [i,f,o,g])
       w_fc_ref:(H, 128)     bf16  FC weight, zero-padded past column 10
       b_fc_ref:(1, 128)     f32   FC bias,   zero-padded past column 10
       out_ref: (TB, 128)    f32   logits (columns >= 10 are zero)."""
    T, TB, _ = xp_ref.shape
    H = HIDDEN

    w_hh = w_hh_ref[...]                                              # bf16 (H, 4H)

    def step(t, carry):
        h, c = carry
        # Leading-dim slice of the time-major projection: pure offset, no relayout.
        gates = xp_ref[t].astype(jnp.float32) + jnp.dot(
            h.astype(jnp.bfloat16), w_hh, preferred_element_type=jnp.float32)
        # Gate order [i, f, o, g]: the three sigmoid gates are one contiguous slice.
        # sigmoid(x) = 0.5 * (tanh(0.5 x) + 1): one EUP push per gate instead of two.
        sig = 0.5 * (jnp.tanh(0.5 * gates[:, 0:3 * H]) + 1.0)
        i_g = sig[:, 0:H]
        f_g = sig[:, H:2 * H]
        o_g = sig[:, 2 * H:3 * H]
        g_g = jnp.tanh(gates[:, 3 * H:4 * H])
        c = f_g * c + i_g * g_g
        h = o_g * jnp.tanh(c)
        return h, c

    h0 = jnp.zeros((TB, H), jnp.float32)
    c0 = jnp.zeros((TB, H), jnp.float32)
    h, _ = jax.lax.fori_loop(0, T, step, (h0, c0), unroll=True)

    # ---- LIF neuron (single step, fresh state), f32 compare; spike exact in bf16 ----
    v = h * (1.0 / TAU)
    spike = jnp.where(v >= V_TH, 1.0, 0.0).astype(jnp.bfloat16)

    # ---- Final FC: bf16 x bf16 single-pass MXU matmul, f32 accumulate + store ----
    out_ref[...] = (jnp.dot(spike, w_fc_ref[...], preferred_element_type=jnp.float32)
                    + b_fc_ref[...])


def _reorder_gates(w):
    """PyTorch LSTM gate order [i, f, g, o] -> kernel order [i, f, o, g] along axis 0."""
    i, f, g, o = jnp.split(w, 4, axis=0)
    return jnp.concatenate([i, f, o, g], axis=0)


def init_params(key):
    """Deterministic init matching PyTorch shapes: LSTM(28,128), Linear(128,10)."""
    k = 1.0 / jnp.sqrt(jnp.float32(HIDDEN))
    ks = jax.random.split(key, 6)
    w_ih = jax.random.uniform(ks[0], (4 * HIDDEN, INPUT_SIZE), minval=-k, maxval=k)
    w_hh = jax.random.uniform(ks[1], (4 * HIDDEN, HIDDEN), minval=-k, maxval=k)
    b_ih = jax.random.uniform(ks[2], (4 * HIDDEN,), minval=-k, maxval=k)
    b_hh = jax.random.uniform(ks[3], (4 * HIDDEN,), minval=-k, maxval=k)
    w_fc = jax.random.uniform(ks[4], (OUT, HIDDEN), minval=-k, maxval=k)
    b_fc = jax.random.uniform(ks[5], (OUT,), minval=-k, maxval=k)

    # Zero-pad FC to 128 output lanes for lane-dense stores; weight in bf16 (exact 0/1 LHS).
    w_fc_t_pad = jnp.zeros((HIDDEN, PAD_OUT), jnp.float32).at[:, :OUT].set(
        w_fc.T.astype(jnp.float32))
    b_fc_pad = jnp.zeros((1, PAD_OUT), jnp.float32).at[0, :OUT].set(
        b_fc.astype(jnp.float32))
    return {
        # gate columns reordered consistently to [i, f, o, g]
        "w_ih_t": _reorder_gates(w_ih).T.astype(jnp.float32),             # (28, 512)  f32
        "w_hh_t": _reorder_gates(w_hh).T.astype(jnp.bfloat16),            # (128, 512) bf16
        "b": _reorder_gates((b_ih + b_hh).reshape(4 * HIDDEN, 1)).reshape(
            4 * HIDDEN).astype(jnp.float32),                              # (512,)     f32
        "w_fc_t_pad": w_fc_t_pad.astype(jnp.bfloat16),                    # (128, 128) bf16
        "b_fc_pad": b_fc_pad,                                             # (1, 128)   f32
    }


def _pick_batch_tile(B):
    """Multiple of 8 sublanes; >=2 tiles when possible (v7x dual TC); cap at 256 (MXU M)."""
    b8 = ((B + 7) // 8) * 8
    if b8 <= 16:
        return b8
    half = (((b8 + 1) // 2) + 7) // 8 * 8
    return min(256, half)


@jax.jit
def hybrid_lstm_forward(input_tensor, params):
    """input_tensor: (B, 1, T, 28) like the PyTorch module. Returns (B, 10) logits."""
    x = jnp.squeeze(input_tensor, axis=1).astype(jnp.float32)      # (B, T, 28)
    B, T, _ = x.shape

    # ---- Hoisted input projection (XLA handles the K=28 matmul fine); time-major bf16 ----
    x_proj = jnp.einsum("btk,kg->tbg", x, params["w_ih_t"]) + params["b"]   # (T, B, 4H) f32
    x_proj = x_proj.astype(jnp.bfloat16)

    TB = _pick_batch_tile(B)
    num_tiles = pl.cdiv(B, TB)
    B_pad = num_tiles * TB
    if B_pad != B:
        x_proj = jnp.pad(x_proj, ((0, 0), (0, B_pad - B), (0, 0)))

    out_pad = pl.pallas_call(
        hybrid_lstm_kernel,
        out_shape=jax.ShapeDtypeStruct((B_pad, PAD_OUT), jnp.float32),
        grid_spec=pltpu.PrefetchScalarGridSpec(
            num_scalar_prefetch=0,
            grid=(num_tiles,),
            in_specs=[
                pl.BlockSpec((T, TB, 4 * HIDDEN), lambda i: (0, i, 0)),    # x_proj tile
                pl.BlockSpec((HIDDEN, 4 * HIDDEN), lambda i: (0, 0)),      # w_hh (bf16)
                pl.BlockSpec((HIDDEN, PAD_OUT), lambda i: (0, 0)),         # fc weight
                pl.BlockSpec((1, PAD_OUT), lambda i: (0, 0)),              # fc bias
            ],
            out_specs=pl.BlockSpec((TB, PAD_OUT), lambda i: (i, 0)),
        ),
        compiler_params=pltpu.CompilerParams(
            dimension_semantics=("parallel",),        # batch tiles shard across TCs (v7x)
            vmem_limit_bytes=32 * 1024 * 1024,        # safe on v5e/v6e/v7x, ample here
        ),
    )(x_proj, params["w_hh_t"], params["w_fc_t_pad"], params["b_fc_pad"])

    return out_pad[:B, :OUT]


if __name__ == "__main__":
    key = jax.random.PRNGKey(0)
    k_param, k_data = jax.random.split(key)

    params = init_params(k_param)

    B, T = 2, 8
    x = jax.random.normal(k_data, (B, 1, T, INPUT_SIZE), dtype=jnp.float32)

    out = hybrid_lstm_forward(x, params)
    out = jax.block_until_ready(out)
    assert out.shape == (B, OUT) and out.dtype == jnp.float32
    assert bool(jnp.all(jnp.isfinite(out)))
    print("KERNEL_OK")
</pallas_src>

<mosaic_0001>
module attributes {stable_mosaic.version = 11 : i64} {
  func.func @hybrid_lstm_kernel(%arg0: i32, %arg1: memref<8x8x512xbf16, #tpu.memory_space<vmem>>, %arg2: memref<128x512xbf16, #tpu.memory_space<vmem>>, %arg3: memref<128x128xbf16, #tpu.memory_space<vmem>>, %arg4: memref<1x128xf32, #tpu.memory_space<vmem>>, %arg5: memref<8x128xf32, #tpu.memory_space<vmem>>) attributes {dimension_semantics = [#tpu.dimension_semantics<parallel>], iteration_bounds = array<i64: 1>, scalar_prefetch = 0 : i64, scratch_operands = 0 : i64, tpu.core_type = #tpu.core_type<tc>, window_params = [{transform_indices = @transform_0, window_bounds = array<i64: 8, 8, 512>}, {pipeline_mode = #tpu.pipeline_mode<synchronous>, transform_indices = @transform_1, window_bounds = array<i64: 128, 512>}, {pipeline_mode = #tpu.pipeline_mode<synchronous>, transform_indices = @transform_2, window_bounds = array<i64: 128, 128>}, {pipeline_mode = #tpu.pipeline_mode<synchronous>, transform_indices = @transform_3, window_bounds = array<i64: 1, 128>}, {transform_indices = @transform_4, window_bounds = array<i64: 8, 128>}]} {
    %c0 = arith.constant 0 : index
    %c0_0 = arith.constant 0 : index
    %0 = vector.load %arg2[%c0, %c0_0] : memref<128x512xbf16, #tpu.memory_space<vmem>>, vector<128x512xbf16>
    %cst = arith.constant 0.000000e+00 : f32
    %1 = vector.broadcast %cst : f32 to vector<8x128xf32>
    %cst_1 = arith.constant 0.000000e+00 : f32
    %2 = vector.broadcast %cst_1 : f32 to vector<8x128xf32>
    %c0_i32 = arith.constant 0 : i32
    %3 = arith.index_cast %c0_i32 : i32 to index
    %c0_2 = arith.constant 0 : index
    %c0_3 = arith.constant 0 : index
    %4 = vector.load %arg1[%3, %c0_2, %c0_3] : memref<8x8x512xbf16, #tpu.memory_space<vmem>>, vector<1x8x512xbf16>
    %5 = vector.shape_cast %4 : vector<1x8x512xbf16> to vector<8x512xbf16>
    %6 = arith.extf %5 : vector<8x512xbf16> to vector<8x512xf32>
    %7 = arith.truncf %1 : vector<8x128xf32> to vector<8x128xbf16>
    %cst_4 = arith.constant dense<0.000000e+00> : vector<8x512xf32>
    %8 = tpu.matmul %7, %0, %cst_4 {dimension_numbers = #tpu.dot_dimension_numbers<[1], [0], [0], [1], [0, 0, 1, 1], [], []>} : vector<8x128xbf16>, vector<128x512xbf16>, vector<8x512xf32> -> vector<8x512xf32>
    %9 = arith.addf %6, %8 : vector<8x512xf32>
    %10 = vector.extract_strided_slice %9 {offsets = [0, 0], sizes = [8, 384], strides = [1, 1]} : vector<8x512xf32> to vector<8x384xf32>
    %cst_5 = arith.constant 5.000000e-01 : f32
    %11 = vector.broadcast %cst_5 : f32 to vector<8x384xf32>
    %12 = arith.mulf %11, %10 : vector<8x384xf32>
    %13 = math.tanh %12 : vector<8x384xf32>
    %cst_6 = arith.constant 1.000000e+00 : f32
    %14 = vector.broadcast %cst_6 : f32 to vector<8x384xf32>
    %15 = arith.addf %13, %14 : vector<8x384xf32>
    %cst_7 = arith.constant 5.000000e-01 : f32
    %16 = vector.broadcast %cst_7 : f32 to vector<8x384xf32>
    %17 = arith.mulf %16, %15 : vector<8x384xf32>
    %18 = vector.extract_strided_slice %17 {offsets = [0, 0], sizes = [8, 128], strides = [1, 1]} : vector<8x384xf32> to vector<8x128xf32>
    %19 = vector.extract_strided_slice %17 {offsets = [0, 128], sizes = [8, 128], strides = [1, 1]} : vector<8x384xf32> to vector<8x128xf32>
    %20 = vector.extract_strided_slice %17 {offsets = [0, 256], sizes = [8, 128], strides = [1, 1]} : vector<8x384xf32> to vector<8x128xf32>
    %21 = vector.extract_strided_slice %9 {offsets = [0, 384], sizes = [8, 128], strides = [1, 1]} : vector<8x512xf32> to vector<8x128xf32>
    %22 = math.tanh %21 : vector<8x128xf32>
    %23 = arith.mulf %19, %2 : vector<8x128xf32>
    %24 = arith.mulf %18, %22 : vector<8x128xf32>
    %25 = arith.addf %23, %24 : vector<8x128xf32>
    %26 = math.tanh %25 : vector<8x128xf32>
    %27 = arith.mulf %20, %26 : vector<8x128xf32>
    %c1_i32 = arith.constant 1 : i32
    %28 = arith.index_cast %c1_i32 : i32 to index
    %c0_8 = arith.constant 0 : index
    %c0_9 = arith.constant 0 : index
    %29 = vector.load %arg1[%28, %c0_8, %c0_9] : memref<8x8x512xbf16, #tpu.memory_space<vmem>>, vector<1x8x512xbf16>
    %30 = vector.shape_cast %29 : vector<1x8x512xbf16> to vector<8x512xbf16>
    %31 = arith.extf %30 : vector<8x512xbf16> to vector<8x512xf32>
    %32 = arith.truncf %27 : vector<8x128xf32> to vector<8x128xbf16>
    %cst_10 = arith.constant dense<0.000000e+00> : vector<8x512xf32>
    %33 = tpu.matmul %32, %0, %cst_10 {dimension_numbers = #tpu.dot_dimension_numbers<[1], [0], [0], [1], [0, 0, 1, 1], [], []>} : vector<8x128xbf16>, vector<128x512xbf16>, vector<8x512xf32> -> vector<8x512xf32>
    %34 = arith.addf %31, %33 : vector<8x512xf32>
    %35 = vector.extract_strided_slice %34 {offsets = [0, 0], sizes = [8, 384], strides = [1, 1]} : vector<8x512xf32> to vector<8x384xf32>
    %cst_11 = arith.constant 5.000000e-01 : f32
    %36 = vector.broadcast %cst_11 : f32 to vector<8x384xf32>
    %37 = arith.mulf %36, %35 : vector<8x384xf32>
    %38 = math.tanh %37 : vector<8x384xf32>
    %cst_12 = arith.constant 1.000000e+00 : f32
    %39 = vector.broadcast %cst_12 : f32 to vector<8x384xf32>
    %40 = arith.addf %38, %39 : vector<8x384xf32>
    %cst_13 = arith.constant 5.000000e-01 : f32
    %41 = vector.broadcast %cst_13 : f32 to vector<8x384xf32>
    %42 = arith.mulf %41, %40 : vector<8x384xf32>
    %43 = vector.extract_strided_slice %42 {offsets = [0, 0], sizes = [8, 128], strides = [1, 1]} : vector<8x384xf32> to vector<8x128xf32>
    %44 = vector.extract_strided_slice %42 {offsets = [0, 128], sizes = [8, 128], strides = [1, 1]} : vector<8x384xf32> to vector<8x128xf32>
    %45 = vector.extract_strided_slice %42 {offsets = [0, 256], sizes = [8, 128], strides = [1, 1]} : vector<8x384xf32> to vector<8x128xf32>
    %46 = vector.extract_strided_slice %34 {offsets = [0, 384], sizes = [8, 128], strides = [1, 1]} : vector<8x512xf32> to vector<8x128xf32>
    %47 = math.tanh %46 : vector<8x128xf32>
    %48 = arith.mulf %44, %25 : vector<8x128xf32>
    %49 = arith.mulf %43, %47 : vector<8x128xf32>
    %50 = arith.addf %48, %49 : vector<8x128xf32>
    %51 = math.tanh %50 : vector<8x128xf32>
    %52 = arith.mulf %45, %51 : vector<8x128xf32>
    %c2_i32 = arith.constant 2 : i32
    %53 = arith.index_cast %c2_i32 : i32 to index
    %c0_14 = arith.constant 0 : index
    %c0_15 = arith.constant 0 : index
    %54 = vector.load %arg1[%53, %c0_14, %c0_15] : memref<8x8x512xbf16, #tpu.memory_space<vmem>>, vector<1x8x512xbf16>
    %55 = vector.shape_cast %54 : vector<1x8x512xbf16> to vector<8x512xbf16>
    %56 = arith.extf %55 : vector<8x512xbf16> to vector<8x512xf32>
    %57 = arith.truncf %52 : vector<8x128xf32> to vector<8x128xbf16>
    %cst_16 = arith.constant dense<0.000000e+00> : vector<8x512xf32>
    %58 = tpu.matmul %57, %0, %cst_16 {dimension_numbers = #tpu.dot_dimension_numbers<[1], [0], [0], [1], [0, 0, 1, 1], [], []>} : vector<8x128xbf16>, vector<128x512xbf16>, vector<8x512xf32> -> vector<8x512xf32>
    %59 = arith.addf %56, %58 : vector<8x512xf32>
    %60 = vector.extract_strided_slice %59 {offsets = [0, 0], sizes = [8, 384], strides = [1, 1]} : vector<8x512xf32> to vector<8x384xf32>
    %cst_17 = arith.constant 5.000000e-01 : f32
    %61 = vector.broadcast %cst_17 : f32 to vector<8x384xf32>
    %62 = arith.mulf %61, %60 : vector<8x384xf32>
    %63 = math.tanh %62 : vector<8x384xf32>
    %cst_18 = arith.constant 1.000000e+00 : f32
    %64 = vector.broadcast %cst_18 : f32 to vector<8x384xf32>
    %65 = arith.addf %63, %64 : vector<8x384xf32>
    %cst_19 = arith.constant 5.000000e-01 : f32
    %66 = vector.broadcast %cst_19 : f32 to vector<8x384xf32>
    %67 = arith.mulf %66, %65 : vector<8x384xf32>
    %68 = vector.extract_strided_slice %67 {offsets = [0, 0], sizes = [8, 128], strides = [1, 1]} : vector<8x384xf32> to vector<8x128xf32>
    %69 = vector.extract_strided_slice %67 {offsets = [0, 128], sizes = [8, 128], strides = [1, 1]} : vector<8x384xf32> to vector<8x128xf32>
    %70 = vector.extract_strided_slice %67 {offsets = [0, 256], sizes = [8, 128], strides = [1, 1]} : vector<8x384xf32> to vector<8x128xf32>
    %71 = vector.extract_strided_slice %59 {offsets = [0, 384], sizes = [8, 128], strides = [1, 1]} : vector<8x512xf32> to vector<8x128xf32>
    %72 = math.tanh %71 : vector<8x128xf32>
    %73 = arith.mulf %69, %50 : vector<8x128xf32>
    %74 = arith.mulf %68, %72 : vector<8x128xf32>
    %75 = arith.addf %73, %74 : vector<8x128xf32>
    %76 = math.tanh %75 : vector<8x128xf32>
    %77 = arith.mulf %70, %76 : vector<8x128xf32>
    %c3_i32 = arith.constant 3 : i32
    %78 = arith.index_cast %c3_i32 : i32 to index
    %c0_20 = arith.constant 0 : index
    %c0_21 = arith.constant 0 : index
    %79 = vector.load %arg1[%78, %c0_20, %c0_21] : memref<8x8x512xbf16, #tpu.memory_space<vmem>>, vector<1x8x512xbf16>
    %80 = vector.shape_cast %79 : vector<1x8x512xbf16> to vector<8x512xbf16>
    %81 = arith.extf %80 : vector<8x512xbf16> to vector<8x512xf32>
    %82 = arith.truncf %77 : vector<8x128xf32> to vector<8x128xbf16>
    %cst_22 = arith.constant dense<0.000000e+00> : vector<8x512xf32>
    %83 = tpu.matmul %82, %0, %cst_22 {dimension_numbers = #tpu.dot_dimension_numbers<[1], [0], [0], [1], [0, 0, 1, 1], [], []>} : vector<8x128xbf16>, vector<128x512xbf16>, vector<8x512xf32> -> vector<8x512xf32>
    %84 = arith.addf %81, %83 : vector<8x512xf32>
    %85 = vector.extract_strided_slice %84 {offsets = [0, 0], sizes = [8, 384], strides = [1, 1]} : vector<8x512xf32> to vector<8x384xf32>
    %cst_23 = arith.constant 5.000000e-01 : f32
    %86 = vector.broadcast %cst_23 : f32 to vector<8x384xf32>
    %87 = arith.mulf %86, %85 : vector<8x384xf32>
    %88 = math.tanh %87 : vector<8x384xf32>
    %cst_24 = arith.constant 1.000000e+00 : f32
    %89 = vector.broadcast %cst_24 : f32 to vector<8x384xf32>
    %90 = arith.addf %88, %89 : vector<8x384xf32>
    %cst_25 = arith.constant 5.000000e-01 : f32
    %91 = vector.broadcast %cst_25 : f32 to vector<8x384xf32>
    %92 = arith.mulf %91, %90 : vector<8x384xf32>
    %93 = vector.extract_strided_slice %92 {offsets = [0, 0], sizes = [8, 128], strides = [1, 1]} : vector<8x384xf32> to vector<8x128xf32>
    %94 = vector.extract_strided_slice %92 {offsets = [0, 128], sizes = [8, 128], strides = [1, 1]} : vector<8x384xf32> to vector<8x128xf32>
    %95 = vector.extract_strided_slice %92 {offsets = [0, 256], sizes = [8, 128], strides = [1, 1]} : vector<8x384xf32> to vector<8x128xf32>
    %96 = vector.extract_strided_slice %84 {offsets = [0, 384], sizes = [8, 128], strides = [1, 1]} : vector<8x512xf32> to vector<8x128xf32>
    %97 = math.tanh %96 : vector<8x128xf32>
    %98 = arith.mulf %94, %75 : vector<8x128xf32>
    %99 = arith.mulf %93, %97 : vector<8x128xf32>
    %100 = arith.addf %98, %99 : vector<8x128xf32>
    %101 = math.tanh %100 : vector<8x128xf32>
    %102 = arith.mulf %95, %101 : vector<8x128xf32>
    %c4_i32 = arith.constant 4 : i32
    %103 = arith.index_cast %c4_i32 : i32 to index
    %c0_26 = arith.constant 0 : index
    %c0_27 = arith.constant 0 : index
    %104 = vector.load %arg1[%103, %c0_26, %c0_27] : memref<8x8x512xbf16, #tpu.memory_space<vmem>>, vector<1x8x512xbf16>
    %105 = vector.shape_cast %104 : vector<1x8x512xbf16> to vector<8x512xbf16>
    %106 = arith.extf %105 : vector<8x512xbf16> to vector<8x512xf32>
    %107 = arith.truncf %102 : vector<8x128xf32> to vector<8x128xbf16>
    %cst_28 = arith.constant dense<0.000000e+00> : vector<8x512xf32>
    %108 = tpu.matmul %107, %0, %cst_28 {dimension_numbers = #tpu.dot_dimension_numbers<[1], [0], [0], [1], [0, 0, 1, 1], [], []>} : vector<8x128xbf16>, vector<128x512xbf16>, vector<8x512xf32> -> vector<8x512xf32>
    %109 = arith.addf %106, %108 : vector<8x512xf32>
    %110 = vector.extract_strided_slice %109 {offsets = [0, 0], sizes = [8, 384], strides = [1, 1]} : vector<8x512xf32> to vector<8x384xf32>
    %cst_29 = arith.constant 5.000000e-01 : f32
    %111 = vector.broadcast %cst_29 : f32 to vector<8x384xf32>
    %112 = arith.mulf %111, %110 : vector<8x384xf32>
    %113 = math.tanh %112 : vector<8x384xf32>
    %cst_30 = arith.constant 1.000000e+00 : f32
    %114 = vector.broadcast %cst_30 : f32 to vector<8x384xf32>
    %115 = arith.addf %113, %114 : vector<8x384xf32>
    %cst_31 = arith.constant 5.000000e-01 : f32
    %116 = vector.broadcast %cst_31 : f32 to vector<8x384xf32>
    %117 = arith.mulf %116, %115 : vector<8x384xf32>
    %118 = vector.extract_strided_slice %117 {offsets = [0, 0], sizes = [8, 128], strides = [1, 1]} : vector<8x384xf32> to vector<8x128xf32>
    %119 = vector.extract_strided_slice %117 {offsets = [0, 128], sizes = [8, 128], strides = [1, 1]} : vector<8x384xf32> to vector<8x128xf32>
    %120 = vector.extract_strided_slice %117 {offsets = [0, 256], sizes = [8, 128], strides = [1, 1]} : vector<8x384xf32> to vector<8x128xf32>
    %121 = vector.extract_strided_slice %109 {offsets = [0, 384], sizes = [8, 128], strides = [1, 1]} : vector<8x512xf32> to vector<8x128xf32>
    %122 = math.tanh %121 : vector<8x128xf32>
    %123 = arith.mulf %119, %100 : vector<8x128xf32>
    %124 = arith.mulf %118, %122 : vector<8x128xf32>
    %125 = arith.addf %123, %124 : vector<8x128xf32>
    %126 = math.tanh %125 : vector<8x128xf32>
    %127 = arith.mulf %120, %126 : vector<8x128xf32>
    %c5_i32 = arith.constant 5 : i32
    %128 = arith.index_cast %c5_i32 : i32 to index
    %c0_32 = arith.constant 0 : index
    %c0_33 = arith.constant 0 : index
    %129 = vector.load %arg1[%128, %c0_32, %c0_33] : memref<8x8x512xbf16, #tpu.memory_space<vmem>>, vector<1x8x512xbf16>
    %130 = vector.shape_cast %129 : vector<1x8x512xbf16> to vector<8x512xbf16>
    %131 = arith.extf %130 : vector<8x512xbf16> to vector<8x512xf32>
    %132 = arith.truncf %127 : vector<8x128xf32> to vector<8x128xbf16>
    %cst_34 = arith.constant dense<0.000000e+00> : vector<8x512xf32>
    %133 = tpu.matmul %132, %0, %cst_34 {dimension_numbers = #tpu.dot_dimension_numbers<[1], [0], [0], [1], [0, 0, 1, 1], [], []>} : vector<8x128xbf16>, vector<128x512xbf16>, vector<8x512xf32> -> vector<8x512xf32>
    %134 = arith.addf %131, %133 : vector<8x512xf32>
    %135 = vector.extract_strided_slice %134 {offsets = [0, 0], sizes = [8, 384], strides = [1, 1]} : vector<8x512xf32> to vector<8x384xf32>
    %cst_35 = arith.constant 5.000000e-01 : f32
    %136 = vector.broadcast %cst_35 : f32 to vector<8x384xf32>
    %137 = arith.mulf %136, %135 : vector<8x384xf32>
    %138 = math.tanh %137 : vector<8x384xf32>
    %cst_36 = arith.constant 1.000000e+00 : f32
    %139 = vector.broadcast %cst_36 : f32 to vector<8x384xf32>
    %140 = arith.addf %138, %139 : vector<8x384xf32>
    %cst_37 = arith.constant 5.000000e-01 : f32
    %141 = vector.broadcast %cst_37 : f32 to vector<8x384xf32>
    %142 = arith.mulf %141, %140 : vector<8x384xf32>
    %143 = vector.extract_strided_slice %142 {offsets = [0, 0], sizes = [8, 128], strides = [1, 1]} : vector<8x384xf32> to vector<8x128xf32>
    %144 = vector.extract_strided_slice %142 {offsets = [0, 128], sizes = [8, 128], strides = [1, 1]} : vector<8x384xf32> to vector<8x128xf32>
    %145 = vector.extract_strided_slice %142 {offsets = [0, 256], sizes = [8, 128], strides = [1, 1]} : vector<8x384xf32> to vector<8x128xf32>
    %146 = vector.extract_strided_slice %134 {offsets = [0, 384], sizes = [8, 128], strides = [1, 1]} : vector<8x512xf32> to vector<8x128xf32>
    %147 = math.tanh %146 : vector<8x128xf32>
    %148 = arith.mulf %144, %125 : vector<8x128xf32>
    %149 = arith.mulf %143, %147 : vector<8x128xf32>
    %150 = arith.addf %148, %149 : vector<8x128xf32>
    %151 = math.tanh %150 : vector<8x128xf32>
    %152 = arith.mulf %145, %151 : vector<8x128xf32>
    %c6_i32 = arith.constant 6 : i32
    %153 = arith.index_cast %c6_i32 : i32 to index
    %c0_38 = arith.constant 0 : index
    %c0_39 = arith.constant 0 : index
    %154 = vector.load %arg1[%153, %c0_38, %c0_39] : memref<8x8x512xbf16, #tpu.memory_space<vmem>>, vector<1x8x512xbf16>
    %155 = vector.shape_cast %154 : vector<1x8x512xbf16> to vector<8x512xbf16>
    %156 = arith.extf %155 : vector<8x512xbf16> to vector<8x512xf32>
    %157 = arith.truncf %152 : vector<8x128xf32> to vector<8x128xbf16>
    %cst_40 = arith.constant dense<0.000000e+00> : vector<8x512xf32>
    %158 = tpu.matmul %157, %0, %cst_40 {dimension_numbers = #tpu.dot_dimension_numbers<[1], [0], [0], [1], [0, 0, 1, 1], [], []>} : vector<8x128xbf16>, vector<128x512xbf16>, vector<8x512xf32> -> vector<8x512xf32>
    %159 = arith.addf %156, %158 : vector<8x512xf32>
    %160 = vector.extract_strided_slice %159 {offsets = [0, 0], sizes = [8, 384], strides = [1, 1]} : vector<8x512xf32> to vector<8x384xf32>
    %cst_41 = arith.constant 5.000000e-01 : f32
    %161 = vector.broadcast %cst_41 : f32 to vector<8x384xf32>
    %162 = arith.mulf %161, %160 : vector<8x384xf32>
    %163 = math.tanh %162 : vector<8x384xf32>
    %cst_42 = arith.constant 1.000000e+00 : f32
    %164 = vector.broadcast %cst_42 : f32 to vector<8x384xf32>
    %165 = arith.addf %163, %164 : vector<8x384xf32>
    %cst_43 = arith.constant 5.000000e-01 : f32
    %166 = vector.broadcast %cst_43 : f32 to vector<8x384xf32>
    %167 = arith.mulf %166, %165 : vector<8x384xf32>
    %168 = vector.extract_strided_slice %167 {offsets = [0, 0], sizes = [8, 128], strides = [1, 1]} : vector<8x384xf32> to vector<8x128xf32>
    %169 = vector.extract_strided_slice %167 {offsets = [0, 128], sizes = [8, 128], strides = [1, 1]} : vector<8x384xf32> to vector<8x128xf32>
    %170 = vector.extract_strided_slice %167 {offsets = [0, 256], sizes = [8, 128], strides = [1, 1]} : vector<8x384xf32> to vector<8x128xf32>
    %171 = vector.extract_strided_slice %159 {offsets = [0, 384], sizes = [8, 128], strides = [1, 1]} : vector<8x512xf32> to vector<8x128xf32>
    %172 = math.tanh %171 : vector<8x128xf32>
    %173 = arith.mulf %169, %150 : vector<8x128xf32>
    %174 = arith.mulf %168, %172 : vector<8x128xf32>
    %175 = arith.addf %173, %174 : vector<8x128xf32>
    %176 = math.tanh %175 : vector<8x128xf32>
    %177 = arith.mulf %170, %176 : vector<8x128xf32>
    %c7_i32 = arith.constant 7 : i32
    %178 = arith.index_cast %c7_i32 : i32 to index
    %c0_44 = arith.constant 0 : index
    %c0_45 = arith.constant 0 : index
    %179 = vector.load %arg1[%178, %c0_44, %c0_45] : memref<8x8x512xbf16, #tpu.memory_space<vmem>>, vector<1x8x512xbf16>
    %180 = vector.shape_cast %179 : vector<1x8x512xbf16> to vector<8x512xbf16>
    %181 = arith.extf %180 : vector<8x512xbf16> to vector<8x512xf32>
    %182 = arith.truncf %177 : vector<8x128xf32> to vector<8x128xbf16>
    %cst_46 = arith.constant dense<0.000000e+00> : vector<8x512xf32>
    %183 = tpu.matmul %182, %0, %cst_46 {dimension_numbers = #tpu.dot_dimension_numbers<[1], [0], [0], [1], [0, 0, 1, 1], [], []>} : vector<8x128xbf16>, vector<128x512xbf16>, vector<8x512xf32> -> vector<8x512xf32>
    %184 = arith.addf %181, %183 : vector<8x512xf32>
    %185 = vector.extract_strided_slice %184 {offsets = [0, 0], sizes = [8, 384], strides = [1, 1]} : vector<8x512xf32> to vector<8x384xf32>
    %cst_47 = arith.constant 5.000000e-01 : f32
    %186 = vector.broadcast %cst_47 : f32 to vector<8x384xf32>
    %187 = arith.mulf %186, %185 : vector<8x384xf32>
    %188 = math.tanh %187 : vector<8x384xf32>
    %cst_48 = arith.constant 1.000000e+00 : f32
    %189 = vector.broadcast %cst_48 : f32 to vector<8x384xf32>
    %190 = arith.addf %188, %189 : vector<8x384xf32>
    %cst_49 = arith.constant 5.000000e-01 : f32
    %191 = vector.broadcast %cst_49 : f32 to vector<8x384xf32>
    %192 = arith.mulf %191, %190 : vector<8x384xf32>
    %193 = vector.extract_strided_slice %192 {offsets = [0, 0], sizes = [8, 128], strides = [1, 1]} : vector<8x384xf32> to vector<8x128xf32>
    %194 = vector.extract_strided_slice %192 {offsets = [0, 128], sizes = [8, 128], strides = [1, 1]} : vector<8x384xf32> to vector<8x128xf32>
    %195 = vector.extract_strided_slice %192 {offsets = [0, 256], sizes = [8, 128], strides = [1, 1]} : vector<8x384xf32> to vector<8x128xf32>
    %196 = vector.extract_strided_slice %184 {offsets = [0, 384], sizes = [8, 128], strides = [1, 1]} : vector<8x512xf32> to vector<8x128xf32>
    %197 = math.tanh %196 : vector<8x128xf32>
    %198 = arith.mulf %194, %175 : vector<8x128xf32>
    %199 = arith.mulf %193, %197 : vector<8x128xf32>
    %200 = arith.addf %198, %199 : vector<8x128xf32>
    %201 = math.tanh %200 : vector<8x128xf32>
    %202 = arith.mulf %195, %201 : vector<8x128xf32>
    %c8_i32 = arith.constant 8 : i32
    %cst_50 = arith.constant 5.000000e-01 : f32
    %203 = vector.broadcast %cst_50 : f32 to vector<8x128xf32>
    %204 = arith.mulf %202, %203 : vector<8x128xf32>
    %cst_51 = arith.constant 1.000000e-01 : f32
    %205 = vector.broadcast %cst_51 : f32 to vector<8x128xf32>
    %206 = arith.cmpf oge, %204, %205 : vector<8x128xf32>
    %cst_52 = arith.constant 1.000000e+00 : f32
    %cst_53 = arith.constant 0.000000e+00 : f32
    %207 = vector.broadcast %cst_52 : f32 to vector<8x128xf32>
    %208 = vector.broadcast %cst_53 : f32 to vector<8x128xf32>
    %209 = arith.select %206, %207, %208 : vector<8x128xi1>, vector<8x128xf32>
    %210 = arith.truncf %209 : vector<8x128xf32> to vector<8x128xbf16>
    %c0_54 = arith.constant 0 : index
    %c0_55 = arith.constant 0 : index
    %211 = vector.load %arg3[%c0_54, %c0_55] : memref<128x128xbf16, #tpu.memory_space<vmem>>, vector<128x128xbf16>
    %cst_56 = arith.constant dense<0.000000e+00> : vector<8x128xf32>
    %212 = tpu.matmul %210, %211, %cst_56 {dimension_numbers = #tpu.dot_dimension_numbers<[1], [0], [0], [1], [0, 0, 1, 1], [], []>} : vector<8x128xbf16>, vector<128x128xbf16>, vector<8x128xf32> -> vector<8x128xf32>
    %c0_57 = arith.constant 0 : index
    %c0_58 = arith.constant 0 : index
    %213 = vector.load %arg4[%c0_57, %c0_58] : memref<1x128xf32, #tpu.memory_space<vmem>>, vector<1x128xf32>
    %214 = vector.broadcast %213 : vector<1x128xf32> to vector<8x128xf32>
    %215 = arith.addf %212, %214 : vector<8x128xf32>
    %c0_59 = arith.constant 0 : index
    %c0_60 = arith.constant 0 : index
    %216 = vector.load %arg5[%c0_59, %c0_60] : memref<8x128xf32, #tpu.memory_space<vmem>>, vector<8x128xf32>
    tpu.vector_store %arg5[%c0_59, %c0_60], %215 {strides = array<i32>} : memref<8x128xf32, #tpu.memory_space<vmem>>, vector<8x128xf32>,
    return
  }
  func.func @transform_0(%arg0: i32) -> (i32, i32, i32) {
    %c0_i32 = arith.constant 0 : i32
    %c0_i32_0 = arith.constant 0 : i32
    %c0_i32_1 = arith.constant 0 : i32
    return %c0_i32, %arg0, %c0_i32_0 : i32, i32, i32
  }
  func.func @transform_1(%arg0: i32) -> (i32, i32) {
    %c0_i32 = arith.constant 0 : i32
    %c0_i32_0 = arith.constant 0 : i32
    %c0_i32_1 = arith.constant 0 : i32
    return %c0_i32, %c0_i32_0 : i32, i32
  }
  func.func @transform_2(%arg0: i32) -> (i32, i32) {
    %c0_i32 = arith.constant 0 : i32
    %c0_i32_0 = arith.constant 0 : i32
    %c0_i32_1 = arith.constant 0 : i32
    return %c0_i32, %c0_i32_0 : i32, i32
  }
  func.func @transform_3(%arg0: i32) -> (i32, i32) {
    %c0_i32 = arith.constant 0 : i32
    %c0_i32_0 = arith.constant 0 : i32
    %c0_i32_1 = arith.constant 0 : i32
    return %c0_i32, %c0_i32_0 : i32, i32
  }
  func.func @transform_4(%arg0: i32) -> (i32, i32) {
    %c0_i32 = arith.constant 0 : i32
    %c0_i32_0 = arith.constant 0 : i32
    return %arg0, %c0_i32 : i32, i32
  }
}

</mosaic_0001>

<llo_original>
// kernel: hybrid_lstm_forward.1
$region0: #{hybrid_lstm_forward.1}
  #allocation0 [shape = 'u32[]', space=smem, size = 0x4, offset = 0x4, fixed_abs, tag = 'smem constant byte address 0x4 - core index']
  #allocation1 [shape = 'u32[144,128]{1,0:T(1,128)}', space=vmem, size = 0x12000, scoped, tag = 'internal scratch']
  %s0 = inlined_call_operand.vmem [shape: bf16[8,8,512], index: 0, kind: input, shape index: {}]
  %s1 = inlined_call_operand.vmem [shape: bf16[128,512], index: 1, kind: input, shape index: {}]
  %s2 = inlined_call_operand.vmem [shape: bf16[128,128], index: 2, kind: input, shape index: {}]
  %s3 = inlined_call_operand.vmem [shape: f32[1,128], index: 3, kind: input, shape index: {}]
  %s4 = inlined_call_operand.vmem [shape: f32[8,128], index: 4, kind: output, shape index: {}]
  %s5 = sld [smem:[#allocation0]]
  $region26: #{hybrid_lstm_forward.1} parent=0
    _
  %s7 = ssub.s32 1, %s5
  %s8 = scalar_select 0, %s7, %s5
  // Predicated region
  $region2: #{hybrid_lstm_forward.1} parent=0 // pred_check
    _
  $region3: #{hybrid_lstm_forward.1} parent=0 // pred_check_branch
    %10 = sbr.rel (0) target = $region5
  $region4: #{hybrid_lstm_forward.1} parent=0 // pred_region
    _
  $region5: #{hybrid_lstm_forward.1} parent=0 // pred_fallthru
    _
  // Predicated region
  $region6: #{hybrid_lstm_forward.1} parent=0 // pred_check
    _
  $region7: #{hybrid_lstm_forward.1} parent=0 // pred_check_branch
    %12 = sbr.rel (0) target = $region9
  $region8: #{hybrid_lstm_forward.1} parent=0 // pred_region
    _
  $region9: #{hybrid_lstm_forward.1} parent=0 // pred_fallthru
    _
  // Predicated region
  $region10: #{hybrid_lstm_forward.1} parent=0 // pred_check
    _
  $region11: #{hybrid_lstm_forward.1} parent=0 // pred_check_branch
    %14 = sbr.rel (0) target = $region13
  $region12: #{hybrid_lstm_forward.1} parent=0 // pred_region
    _
  $region13: #{hybrid_lstm_forward.1} parent=0 // pred_fallthru
    _
  // Predicated region
  $region14: #{hybrid_lstm_forward.1} parent=0 // pred_check
    _
  $region15: #{hybrid_lstm_forward.1} parent=0 // pred_check_branch
    %16 = sbr.rel (0) target = $region17
  $region16: #{hybrid_lstm_forward.1} parent=0 // pred_region
    _
  $region17: #{hybrid_lstm_forward.1} parent=0 // pred_fallthru
    _
  %v18 = vld [vmem:[%s1] sm:$0xff]
  %v19 = vld [vmem:[%s1 + $0x8] sm:$0xff]
  %v20 = vld [vmem:[%s1 + $0x10] sm:$0xff]
  %v21 = vld [vmem:[%s1 + $0x18] sm:$0xff]
  %v22 = vld [vmem:[%s1 + $0x20] sm:$0xff]
  %v23 = vld [vmem:[%s1 + $0x28] sm:$0xff]
  %v24 = vld [vmem:[%s1 + $0x30] sm:$0xff]
  %v25 = vld [vmem:[%s1 + $0x38] sm:$0xff]
  %v26 = vld [vmem:[%s1 + $0x40] sm:$0xff]
  %v27 = vld [vmem:[%s1 + $0x48] sm:$0xff]
  %v28 = vld [vmem:[%s1 + $0x50] sm:$0xff]
  %v29 = vld [vmem:[%s1 + $0x58] sm:$0xff]
  %v30 = vld [vmem:[%s1 + $0x60] sm:$0xff]
  %v31 = vld [vmem:[%s1 + $0x68] sm:$0xff]
  %v32 = vld [vmem:[%s1 + $0x70] sm:$0xff]
  %v33 = vld [vmem:[%s1 + $0x78] sm:$0xff]
  %v34 = vld [vmem:[%s1 + $0x80] sm:$0xff]
  %v35 = vld [vmem:[%s1 + $0x88] sm:$0xff]
  %v36 = vld [vmem:[%s1 + $0x90] sm:$0xff]
  %v37 = vld [vmem:[%s1 + $0x98] sm:$0xff]
  %v38 = vld [vmem:[%s1 + $0xa0] sm:$0xff]
  %v39 = vld [vmem:[%s1 + $0xa8] sm:$0xff]
  %v40 = vld [vmem:[%s1 + $0xb0] sm:$0xff]
  %v41 = vld [vmem:[%s1 + $0xb8] sm:$0xff]
  %v42 = vld [vmem:[%s1 + $0xc0] sm:$0xff]
  %v43 = vld [vmem:[%s1 + $0xc8] sm:$0xff]
  %v44 = vld [vmem:[%s1 + $0xd0] sm:$0xff]
  %v45 = vld [vmem:[%s1 + $0xd8] sm:$0xff]
  %v46 = vld [vmem:[%s1 + $0xe0] sm:$0xff]
  %v47 = vld [vmem:[%s1 + $0xe8] sm:$0xff]
  %v48 = vld [vmem:[%s1 + $0xf0] sm:$0xff]
  %v49 = vld [vmem:[%s1 + $0xf8] sm:$0xff]
  %v50 = vld [vmem:[%s0] sm:$0xff]
  %v51 = vld [vmem:[%s0 + $0x8] sm:$0xff]
  %v52 = vunpack.c.l.bf16 %v50
  %v53 = vunpack.c.h.bf16 %v50
  %v54 = vunpack.c.l.bf16 %v51
  %v55 = vunpack.c.h.bf16 %v51
  %v88 = vunpack.c.l.b16 %v18
  %v89 = vunpack.c.h.b16 %v18
  %v90 = vunpack.c.l.b16 %v19
  %v91 = vunpack.c.h.b16 %v19
  %v92 = vunpack.c.l.b16 %v20
  %v93 = vunpack.c.h.b16 %v20
  %v94 = vunpack.c.l.b16 %v21
  %v95 = vunpack.c.h.b16 %v21
  %v96 = vunpack.c.l.b16 %v22
  %v97 = vunpack.c.h.b16 %v22
  %v98 = vunpack.c.l.b16 %v23
  %v99 = vunpack.c.h.b16 %v23
  %v100 = vunpack.c.l.b16 %v24
  %v101 = vunpack.c.h.b16 %v24
  %v102 = vunpack.c.l.b16 %v25
  %v103 = vunpack.c.h.b16 %v25
  %v104 = vunpack.c.l.b16 %v26
  %v105 = vunpack.c.h.b16 %v26
  %v106 = vunpack.c.l.b16 %v27
  %v107 = vunpack.c.h.b16 %v27
  %v108 = vunpack.c.l.b16 %v28
  %v109 = vunpack.c.h.b16 %v28
  %v110 = vunpack.c.l.b16 %v29
  %v111 = vunpack.c.h.b16 %v29
  %v112 = vunpack.c.l.b16 %v30
  %v113 = vunpack.c.h.b16 %v30
  %v114 = vunpack.c.l.b16 %v31
  %v115 = vunpack.c.h.b16 %v31
  %v116 = vunpack.c.l.b16 %v32
  %v117 = vunpack.c.h.b16 %v32
  %v118 = vunpack.c.l.b16 %v33
  %v119 = vunpack.c.h.b16 %v33
  %v120 = vunpack.c.l.b16 %v34
  %v121 = vunpack.c.h.b16 %v34
  %v122 = vunpack.c.l.b16 %v35
  %v123 = vunpack.c.h.b16 %v35
  %v124 = vunpack.c.l.b16 %v36
  %v125 = vunpack.c.h.b16 %v36
  %v126 = vunpack.c.l.b16 %v37
  %v127 = vunpack.c.h.b16 %v37
  %v128 = vunpack.c.l.b16 %v38
  %v129 = vunpack.c.h.b16 %v38
  %v130 = vunpack.c.l.b16 %v39
  %v131 = vunpack.c.h.b16 %v39
  %v132 = vunpack.c.l.b16 %v40
  %v133 = vunpack.c.h.b16 %v40
  %v134 = vunpack.c.l.b16 %v41
  %v135 = vunpack.c.h.b16 %v41
  %v136 = vunpack.c.l.b16 %v42
  %v137 = vunpack.c.h.b16 %v42
  %v138 = vunpack.c.l.b16 %v43
  %v139 = vunpack.c.h.b16 %v43
  %v140 = vunpack.c.l.b16 %v44
  %v141 = vunpack.c.h.b16 %v44
  %v142 = vunpack.c.l.b16 %v45
  %v143 = vunpack.c.h.b16 %v45
  %v144 = vunpack.c.l.b16 %v46
  %v145 = vunpack.c.h.b16 %v46
  %v146 = vunpack.c.l.b16 %v47
  %v147 = vunpack.c.h.b16 %v47
  %v148 = vunpack.c.l.b16 %v48
  %v149 = vunpack.c.h.b16 %v48
  %v150 = vunpack.c.l.b16 %v49
  %v151 = vunpack.c.h.b16 %v49
  %v152 = vpack.c.b16 %v92, %v88
  %v153 = vpack.c.b16 %v93, %v89
  %v154 = vpack.c.b16 %v94, %v90
  %v155 = vpack.c.b16 %v95, %v91
  %v156 = vpack.c.b16 %v100, %v96
  %v157 = vpack.c.b16 %v101, %v97
  %v158 = vpack.c.b16 %v102, %v98
  %v159 = vpack.c.b16 %v103, %v99
  %v160 = vpack.c.b16 %v108, %v104
  %v161 = vpack.c.b16 %v109, %v105
  %v162 = vpack.c.b16 %v110, %v106
  %v163 = vpack.c.b16 %v111, %v107
  %v164 = vpack.c.b16 %v116, %v112
  %v165 = vpack.c.b16 %v117, %v113
  %v166 = vpack.c.b16 %v118, %v114
  %v167 = vpack.c.b16 %v119, %v115
  %v168 = vpack.c.b16 %v124, %v120
  %v169 = vpack.c.b16 %v125, %v121
  %v170 = vpack.c.b16 %v126, %v122
  %v171 = vpack.c.b16 %v127, %v123
  %v172 = vpack.c.b16 %v132, %v128
  %v173 = vpack.c.b16 %v133, %v129
  %v174 = vpack.c.b16 %v134, %v130
  %v175 = vpack.c.b16 %v135, %v131
  %v176 = vpack.c.b16 %v140, %v136
  %v177 = vpack.c.b16 %v141, %v137
  %v178 = vpack.c.b16 %v142, %v138
  %v179 = vpack.c.b16 %v143, %v139
  %v180 = vpack.c.b16 %v148, %v144
  %v181 = vpack.c.b16 %v149, %v145
  %v182 = vpack.c.b16 %v150, %v146
  %v183 = vpack.c.b16 %v151, %v147
  %216 = vmatprep.subr.bf16.mxu0 %v153
  %217 = vmatpush1.bf16.msra.mxu0 %v152
  %218 = vmatprep.subr.bf16.mxu0 %v157
  %219 = vmatpush1.bf16.msra.mxu0 %v156
  %220 = vmatprep.subr.bf16.mxu0 %v161
  %221 = vmatpush1.bf16.msra.mxu0 %v160
  %222 = vmatprep.subr.bf16.mxu0 %v165
  %223 = vmatpush1.bf16.msra.mxu0 %v164
  %224 = vmatprep.subr.bf16.mxu0 %v169
  %225 = vmatpush1.bf16.msra.mxu0 %v168
  %226 = vmatprep.subr.bf16.mxu0 %v173
  %227 = vmatpush1.bf16.msra.mxu0 %v172
  %228 = vmatprep.subr.bf16.mxu0 %v177
  %229 = vmatpush1.bf16.msra.mxu0 %v176
  %230 = vmatprep.subr.bf16.mxu0 %v181
  %231 = vmatpush1.bf16.msra.mxu0 %v180
  %232 = vmatprep.subr.bf16.mxu0 0
  %233 = vmatpush1.bf16.msra.mxu0 0
  %234 = vmatprep.subr.bf16.mxu0 0
  %235 = vmatpush1.bf16.msra.mxu0 0
  %236 = vmatprep.subr.bf16.mxu0 0
  %237 = vmatpush1.bf16.msra.mxu0 0
  %238 = vmatprep.subr.bf16.mxu0 0
  %239 = vmatpush1.bf16.msra.mxu0 0
  %240 = vmatprep.subr.bf16.mxu0 0
  %241 = vmatpush1.bf16.msra.mxu0 0
  %242 = vmatprep.subr.bf16.mxu0 0
  %243 = vmatpush1.bf16.msra.mxu0 0
  %244 = vmatprep.subr.bf16.mxu0 0
  %245 = vmatpush1.bf16.msra.mxu0 0
  %246 = vmatprep.subr.bf16.mxu0 0
  %247 = vmatpush1.bf16.msra.mxu0 0
  %248 = vmatprep.mubr.bf16.mxu0 0
  %249 = vmatmul.mubr.bf16.gmra.mrb[0].mxu0 0
  %v250 = vpop.f32.mrb[0].mxu0
  %v251 = vadd.f32 0.0, %v250
  %v252 = vpop.f32.mrb[0].mxu0
  %v253 = vadd.f32 0.0, %v252
  %v254 = vpop.f32.mrb[0].mxu0
  %v255 = vpop.f32.mrb[0].mxu0
  %256 = vdwg.mxu0
  %257 = vmatprep.subr.bf16.mxu0 %v155
  %258 = vmatpush1.bf16.msra.mxu0 %v154
  %259 = vmatprep.subr.bf16.mxu0 %v159
  %260 = vmatpush1.bf16.msra.mxu0 %v158
  %261 = vmatprep.subr.bf16.mxu0 %v163
  %262 = vmatpush1.bf16.msra.mxu0 %v162
  %263 = vmatprep.subr.bf16.mxu0 %v167
  %264 = vmatpush1.bf16.msra.mxu0 %v166
  %265 = vmatprep.subr.bf16.mxu0 %v171
  %266 = vmatpush1.bf16.msra.mxu0 %v170
  %267 = vmatprep.subr.bf16.mxu0 %v175
  %268 = vmatpush1.bf16.msra.mxu0 %v174
  %269 = vmatprep.subr.bf16.mxu0 %v179
  %270 = vmatpush1.bf16.msra.mxu0 %v178
  %271 = vmatprep.subr.bf16.mxu0 %v183
  %272 = vmatpush1.bf16.msra.mxu0 %v182
  %273 = vmatprep.subr.bf16.mxu0 0
  %274 = vmatpush1.bf16.msra.mxu0 0
  %275 = vmatprep.subr.bf16.mxu0 0
  %276 = vmatpush1.bf16.msra.mxu0 0
  %277 = vmatprep.subr.bf16.mxu0 0
  %278 = vmatpush1.bf16.msra.mxu0 0
  %279 = vmatprep.subr.bf16.mxu0 0
  %280 = vmatpush1.bf16.msra.mxu0 0
  %281 = vmatprep.subr.bf16.mxu0 0
  %282 = vmatpush1.bf16.msra.mxu0 0
  %283 = vmatprep.subr.bf16.mxu0 0
  %284 = vmatpush1.bf16.msra.mxu0 0
  %285 = vmatprep.subr.bf16.mxu0 0
  %286 = vmatpush1.bf16.msra.mxu0 0
  %287 = vmatprep.subr.bf16.mxu0 0
  %288 = vmatpush1.bf16.msra.mxu0 0
  %289 = vmatprep.mubr.bf16.mxu0 0
  %290 = vmatmul.mubr.bf16.gmra.mrb[0].mxu0 0
  %v291 = vpop.f32.mrb[0].mxu0
  %v292 = vadd.f32 0.0, %v291
  %v293 = vpop.f32.mrb[0].mxu0
  %v294 = vadd.f32 0.0, %v293
  %v295 = vpop.f32.mrb[0].mxu0
  %v296 = vpop.f32.mrb[0].mxu0
  %297 = vdwg.mxu0
  %v298 = vadd.f32 %v52, %v251
  %v299 = vadd.f32 %v53, %v253
  %v300 = vadd.f32 %v54, %v292
  %v301 = vadd.f32 %v55, %v294
  %v302 = vmul.f32 %v298, 0.5
  %v303 = vmul.f32 %v299, 0.5
  %v304 = vmul.f32 %v300, 0.5
  %v305 = vtanh.pop %v302
  %v306 = vtanh.pop %v303
  %v307 = vtanh.pop %v304
  %v308 = vadd.f32 %v305, 1.0
  %v309 = vadd.f32 %v306, 1.0
  %v310 = vadd.f32 %v307, 1.0
  %v311 = vmul.f32 %v308, 0.5
  %v312 = vmul.f32 %v309, 0.5
  %v313 = vmul.f32 %v310, 0.5
  %v314 = vtanh.pop %v301
  %v315 = vmul.f32 %v312, 0.0
  %v316 = vmul.f32 %v311, %v314
  %v317 = vadd.f32 %v315, %v316
  %v318 = vtanh.pop %v317
  %v319 = vmul.f32 %v313, %v318
  %s320 = scalar_lea.vmem %s0, 16
  %v321 = vld [vmem:[%s320] sm:$0xff]
  %v322 = vld [vmem:[%s320 + $0x8] sm:$0xff]
  %v323 = vunpack.c.l.bf16 %v321
  %v324 = vunpack.c.h.bf16 %v321
  %v325 = vunpack.c.l.bf16 %v322
  %v326 = vunpack.c.h.bf16 %v322
  %v327 = vpack.c.bf16 %v319, %v319
  %328 = vmatprep.subr.bf16.mxu0 %v153
  %329 = vmatpush1.bf16.msra.mxu0 %v152
  %330 = vmatprep.subr.bf16.mxu0 %v157
  %331 = vmatpush1.bf16.msra.mxu0 %v156
  %332 = vmatprep.subr.bf16.mxu0 %v161
  %333 = vmatpush1.bf16.msra.mxu0 %v160
  %334 = vmatprep.subr.bf16.mxu0 %v165
  %335 = vmatpush1.bf16.msra.mxu0 %v164
  %336 = vmatprep.subr.bf16.mxu0 %v169
  %337 = vmatpush1.bf16.msra.mxu0 %v168
  %338 = vmatprep.subr.bf16.mxu0 %v173
  %339 = vmatpush1.bf16.msra.mxu0 %v172
  %340 = vmatprep.subr.bf16.mxu0 %v177
  %341 = vmatpush1.bf16.msra.mxu0 %v176
  %342 = vmatprep.subr.bf16.mxu0 %v181
  %343 = vmatpush1.bf16.msra.mxu0 %v180
  %344 = vmatprep.subr.bf16.mxu0 0
  %345 = vmatpush1.bf16.msra.mxu0 0
  %346 = vmatprep.subr.bf16.mxu0 0
  %347 = vmatpush1.bf16.msra.mxu0 0
  %348 = vmatprep.subr.bf16.mxu0 0
  %349 = vmatpush1.bf16.msra.mxu0 0
  %350 = vmatprep.subr.bf16.mxu0 0
  %351 = vmatpush1.bf16.msra.mxu0 0
  %352 = vmatprep.subr.bf16.mxu0 0
  %353 = vmatpush1.bf16.msra.mxu0 0
  %354 = vmatprep.subr.bf16.mxu0 0
  %355 = vmatpush1.bf16.msra.mxu0 0
  %356 = vmatprep.subr.bf16.mxu0 0
  %357 = vmatpush1.bf16.msra.mxu0 0
  %358 = vmatprep.subr.bf16.mxu0 0
  %359 = vmatpush1.bf16.msra.mxu0 0
  %360 = vmatprep.mubr.bf16.mxu0 0
  %361 = vmatmul.mubr.bf16.gmra.mrb[0].mxu0 %v327
  %v362 = vpop.f32.mrb[0].mxu0
  %v363 = vadd.f32 0.0, %v362
  %v364 = vpop.f32.mrb[0].mxu0
  %v365 = vadd.f32 0.0, %v364
  %v366 = vpop.f32.mrb[0].mxu0
  %v367 = vpop.f32.mrb[0].mxu0
  %368 = vdwg.mxu0
  %369 = vmatprep.subr.bf16.mxu0 %v155
  %370 = vmatpush1.bf16.msra.mxu0 %v154
  %371 = vmatprep.subr.bf16.mxu0 %v159
  %372 = vmatpush1.bf16.msra.mxu0 %v158
  %373 = vmatprep.subr.bf16.mxu0 %v163
  %374 = vmatpush1.bf16.msra.mxu0 %v162
  %375 = vmatprep.subr.bf16.mxu0 %v167
  %376 = vmatpush1.bf16.msra.mxu0 %v166
  %377 = vmatprep.subr.bf16.mxu0 %v171
  %378 = vmatpush1.bf16.msra.mxu0 %v170
  %379 = vmatprep.subr.bf16.mxu0 %v175
  %380 = vmatpush1.bf16.msra.mxu0 %v174
  %381 = vmatprep.subr.bf16.mxu0 %v179
  %382 = vmatpush1.bf16.msra.mxu0 %v178
  %383 = vmatprep.subr.bf16.mxu0 %v183
  %384 = vmatpush1.bf16.msra.mxu0 %v182
  %385 = vmatprep.subr.bf16.mxu0 0
  %386 = vmatpush1.bf16.msra.mxu0 0
  %387 = vmatprep.subr.bf16.mxu0 0
  %388 = vmatpush1.bf16.msra.mxu0 0
  %389 = vmatprep.subr.bf16.mxu0 0
  %390 = vmatpush1.bf16.msra.mxu0 0
  %391 = vmatprep.subr.bf16.mxu0 0
  %392 = vmatpush1.bf16.msra.mxu0 0
  %393 = vmatprep.subr.bf16.mxu0 0
  %394 = vmatpush1.bf16.msra.mxu0 0
  %395 = vmatprep.subr.bf16.mxu0 0
  %396 = vmatpush1.bf16.msra.mxu0 0
  %397 = vmatprep.subr.bf16.mxu0 0
  %398 = vmatpush1.bf16.msra.mxu0 0
  %399 = vmatprep.subr.bf16.mxu0 0
  %400 = vmatpush1.bf16.msra.mxu0 0
  %401 = vmatprep.mubr.bf16.mxu0 0
  %402 = vmatmul.mubr.bf16.gmra.mrb[0].mxu0 %v327
  %v403 = vpop.f32.mrb[0].mxu0
  %v404 = vadd.f32 0.0, %v403
  %v405 = vpop.f32.mrb[0].mxu0
  %v406 = vadd.f32 0.0, %v405
  %v407 = vpop.f32.mrb[0].mxu0
  %v408 = vpop.f32.mrb[0].mxu0
  %409 = vdwg.mxu0
  %v410 = vadd.f32 %v323, %v363
  %v411 = vadd.f32 %v324, %v365
  %v412 = vadd.f32 %v325, %v404
  %v413 = vadd.f32 %v326, %v406
  %v414 = vmul.f32 %v410, 0.5
  %v415 = vmul.f32 %v411, 0.5
  %v416 = vmul.f32 %v412, 0.5
  %v417 = vtanh.pop %v414
  %v418 = vtanh.pop %v415
  %v419 = vtanh.pop %v416
  %v420 = vadd.f32 %v417, 1.0
  %v421 = vadd.f32 %v418, 1.0
  %v422 = vadd.f32 %v419, 1.0
  %v423 = vmul.f32 %v420, 0.5
  %v424 = vmul.f32 %v421, 0.5
  %v425 = vmul.f32 %v422, 0.5
  %v426 = vtanh.pop %v413
  %v427 = vmul.f32 %v424, %v317
  %v428 = vmul.f32 %v423, %v426
  %v429 = vadd.f32 %v427, %v428
  %v430 = vtanh.pop %v429
  %v431 = vmul.f32 %v425, %v430
  %s432 = scalar_lea.vmem %s0, 32
  %v433 = vld [vmem:[%s432] sm:$0xff]
  %v434 = vld [vmem:[%s432 + $0x8] sm:$0xff]
  %v435 = vunpack.c.l.bf16 %v433
  %v436 = vunpack.c.h.bf16 %v433
  %v437 = vunpack.c.l.bf16 %v434
  %v438 = vunpack.c.h.bf16 %v434
  %v439 = vpack.c.bf16 %v431, %v431
  %440 = vmatprep.subr.bf16.mxu0 %v153
  %441 = vmatpush1.bf16.msra.mxu0 %v152
  %442 = vmatprep.subr.bf16.mxu0 %v157
  %443 = vmatpush1.bf16.msra.mxu0 %v156
  %444 = vmatprep.subr.bf16.mxu0 %v161
  %445 = vmatpush1.bf16.msra.mxu0 %v160
  %446 = vmatprep.subr.bf16.mxu0 %v165
  %447 = vmatpush1.bf16.msra.mxu0 %v164
  %448 = vmatprep.subr.bf16.mxu0 %v169
  %449 = vmatpush1.bf16.msra.mxu0 %v168
  %450 = vmatprep.subr.bf16.mxu0 %v173
  %451 = vmatpush1.bf16.msra.mxu0 %v172
  %452 = vmatprep.subr.bf16.mxu0 %v177
  %453 = vmatpush1.bf16.msra.mxu0 %v176
  %454 = vmatprep.subr.bf16.mxu0 %v181
  %455 = vmatpush1.bf16.msra.mxu0 %v180
  %456 = vmatprep.subr.bf16.mxu0 0
  %457 = vmatpush1.bf16.msra.mxu0 0
  %458 = vmatprep.subr.bf16.mxu0 0
  %459 = vmatpush1.bf16.msra.mxu0 0
  %460 = vmatprep.subr.bf16.mxu0 0
  %461 = vmatpush1.bf16.msra.mxu0 0
  %462 = vmatprep.subr.bf16.mxu0 0
  %463 = vmatpush1.bf16.msra.mxu0 0
  %464 = vmatprep.subr.bf16.mxu0 0
  %465 = vmatpush1.bf16.msra.mxu0 0
  %466 = vmatprep.subr.bf16.mxu0 0
  %467 = vmatpush1.bf16.msra.mxu0 0
  %468 = vmatprep.subr.bf16.mxu0 0
  %469 = vmatpush1.bf16.msra.mxu0 0
  %470 = vmatprep.subr.bf16.mxu0 0
  %471 = vmatpush1.bf16.msra.mxu0 0
  %472 = vmatprep.mubr.bf16.mxu0 0
  %473 = vmatmul.mubr.bf16.gmra.mrb[0].mxu0 %v439
  %v474 = vpop.f32.mrb[0].mxu0
  %v475 = vadd.f32 0.0, %v474
  %v476 = vpop.f32.mrb[0].mxu0
  %v477 = vadd.f32 0.0, %v476
  %v478 = vpop.f32.mrb[0].mxu0
  %v479 = vpop.f32.mrb[0].mxu0
  %480 = vdwg.mxu0
  %481 = vmatprep.subr.bf16.mxu0 %v155
  %482 = vmatpush1.bf16.msra.mxu0 %v154
  %483 = vmatprep.subr.bf16.mxu0 %v159
  %484 = vmatpush1.bf16.msra.mxu0 %v158
  %485 = vmatprep.subr.bf16.mxu0 %v163
  %486 = vmatpush1.bf16.msra.mxu0 %v162
  %487 = vmatprep.subr.bf16.mxu0 %v167
  %488 = vmatpush1.bf16.msra.mxu0 %v166
  %489 = vmatprep.subr.bf16.mxu0 %v171
  %490 = vmatpush1.bf16.msra.mxu0 %v170
  %491 = vmatprep.subr.bf16.mxu0 %v175
  %492 = vmatpush1.bf16.msra.mxu0 %v174
  %493 = vmatprep.subr.bf16.mxu0 %v179
  %494 = vmatpush1.bf16.msra.mxu0 %v178
  %495 = vmatprep.subr.bf16.mxu0 %v183
  %496 = vmatpush1.bf16.msra.mxu0 %v182
  %497 = vmatprep.subr.bf16.mxu0 0
  %498 = vmatpush1.bf16.msra.mxu0 0
  %499 = vmatprep.subr.bf16.mxu0 0
  %500 = vmatpush1.bf16.msra.mxu0 0
  %501 = vmatprep.subr.bf16.mxu0 0
  %502 = vmatpush1.bf16.msra.mxu0 0
  %503 = vmatprep.subr.bf16.mxu0 0
  %504 = vmatpush1.bf16.msra.mxu0 0
  %505 = vmatprep.subr.bf16.mxu0 0
  %506 = vmatpush1.bf16.msra.mxu0 0
  %507 = vmatprep.subr.bf16.mxu0 0
  %508 = vmatpush1.bf16.msra.mxu0 0
  %509 = vmatprep.subr.bf16.mxu0 0
  %510 = vmatpush1.bf16.msra.mxu0 0
  %511 = vmatprep.subr.bf16.mxu0 0
  %512 = vmatpush1.bf16.msra.mxu0 0
  %513 = vmatprep.mubr.bf16.mxu0 0
  %514 = vmatmul.mubr.bf16.gmra.mrb[0].mxu0 %v439
  %v515 = vpop.f32.mrb[0].mxu0
  %v516 = vadd.f32 0.0, %v515
  %v517 = vpop.f32.mrb[0].mxu0
  %v518 = vadd.f32 0.0, %v517
  %v519 = vpop.f32.mrb[0].mxu0
  %v520 = vpop.f32.mrb[0].mxu0
  %521 = vdwg.mxu0
  %v522 = vadd.f32 %v435, %v475
  %v523 = vadd.f32 %v436, %v477
  %v524 = vadd.f32 %v437, %v516
  %v525 = vadd.f32 %v438, %v518
  %v526 = vmul.f32 %v522, 0.5
  %v527 = vmul.f32 %v523, 0.5
  %v528 = vmul.f32 %v524, 0.5
  %v529 = vtanh.pop %v526
  %v530 = vtanh.pop %v527
  %v531 = vtanh.pop %v528
  %v532 = vadd.f32 %v529, 1.0
  %v533 = vadd.f32 %v530, 1.0
  %v534 = vadd.f32 %v531, 1.0
  %v535 = vmul.f32 %v532, 0.5
  %v536 = vmul.f32 %v533, 0.5
  %v537 = vmul.f32 %v534, 0.5
  %v538 = vtanh.pop %v525
  %v539 = vmul.f32 %v536, %v429
  %v540 = vmul.f32 %v535, %v538
  %v541 = vadd.f32 %v539, %v540
  %v542 = vtanh.pop %v541
  %v543 = vmul.f32 %v537, %v542
  %s544 = scalar_lea.vmem %s0, 48
  %v545 = vld [vmem:[%s544] sm:$0xff]
  %v546 = vld [vmem:[%s544 + $0x8] sm:$0xff]
  %v547 = vunpack.c.l.bf16 %v545
  %v548 = vunpack.c.h.bf16 %v545
  %v549 = vunpack.c.l.bf16 %v546
  %v550 = vunpack.c.h.bf16 %v546
  %v551 = vpack.c.bf16 %v543, %v543
  %552 = vmatprep.subr.bf16.mxu0 %v153
  %553 = vmatpush1.bf16.msra.mxu0 %v152
  %554 = vmatprep.subr.bf16.mxu0 %v157
  %555 = vmatpush1.bf16.msra.mxu0 %v156
  %556 = vmatprep.subr.bf16.mxu0 %v161
  %557 = vmatpush1.bf16.msra.mxu0 %v160
  %558 = vmatprep.subr.bf16.mxu0 %v165
  %559 = vmatpush1.bf16.msra.mxu0 %v164
  %560 = vmatprep.subr.bf16.mxu0 %v169
  %561 = vmatpush1.bf16.msra.mxu0 %v168
  %562 = vmatprep.subr.bf16.mxu0 %v173
  %563 = vmatpush1.bf16.msra.mxu0 %v172
  %564 = vmatprep.subr.bf16.mxu0 %v177
  %565 = vmatpush1.bf16.msra.mxu0 %v176
  %566 = vmatprep.subr.bf16.mxu0 %v181
  %567 = vmatpush1.bf16.msra.mxu0 %v180
  %568 = vmatprep.subr.bf16.mxu0 0
  %569 = vmatpush1.bf16.msra.mxu0 0
  %570 = vmatprep.subr.bf16.mxu0 0
  %571 = vmatpush1.bf16.msra.mxu0 0
  %572 = vmatprep.subr.bf16.mxu0 0
  %573 = vmatpush1.bf16.msra.mxu0 0
  %574 = vmatprep.subr.bf16.mxu0 0
  %575 = vmatpush1.bf16.msra.mxu0 0
  %576 = vmatprep.subr.bf16.mxu0 0
  %577 = vmatpush1.bf16.msra.mxu0 0
  %578 = vmatprep.subr.bf16.mxu0 0
  %579 = vmatpush1.bf16.msra.mxu0 0
  %580 = vmatprep.subr.bf16.mxu0 0
  %581 = vmatpush1.bf16.msra.mxu0 0
  %582 = vmatprep.subr.bf16.mxu0 0
  %583 = vmatpush1.bf16.msra.mxu0 0
  %584 = vmatprep.mubr.bf16.mxu0 0
  %585 = vmatmul.mubr.bf16.gmra.mrb[0].mxu0 %v551
  %v586 = vpop.f32.mrb[0].mxu0
  %v587 = vadd.f32 0.0, %v586
  %v588 = vpop.f32.mrb[0].mxu0
  %v589 = vadd.f32 0.0, %v588
  %v590 = vpop.f32.mrb[0].mxu0
  %v591 = vpop.f32.mrb[0].mxu0
  %592 = vdwg.mxu0
  %593 = vmatprep.subr.bf16.mxu0 %v155
  %594 = vmatpush1.bf16.msra.mxu0 %v154
  %595 = vmatprep.subr.bf16.mxu0 %v159
  %596 = vmatpush1.bf16.msra.mxu0 %v158
  %597 = vmatprep.subr.bf16.mxu0 %v163
  %598 = vmatpush1.bf16.msra.mxu0 %v162
  %599 = vmatprep.subr.bf16.mxu0 %v167
  %600 = vmatpush1.bf16.msra.mxu0 %v166
  %601 = vmatprep.subr.bf16.mxu0 %v171
  %602 = vmatpush1.bf16.msra.mxu0 %v170
  %603 = vmatprep.subr.bf16.mxu0 %v175
  %604 = vmatpush1.bf16.msra.mxu0 %v174
  %605 = vmatprep.subr.bf16.mxu0 %v179
  %606 = vmatpush1.bf16.msra.mxu0 %v178
  %607 = vmatprep.subr.bf16.mxu0 %v183
  %608 = vmatpush1.bf16.msra.mxu0 %v182
  %609 = vmatprep.subr.bf16.mxu0 0
  %610 = vmatpush1.bf16.msra.mxu0 0
  %611 = vmatprep.subr.bf16.mxu0 0
  %612 = vmatpush1.bf16.msra.mxu0 0
  %613 = vmatprep.subr.bf16.mxu0 0
  %614 = vmatpush1.bf16.msra.mxu0 0
  %615 = vmatprep.subr.bf16.mxu0 0
  %616 = vmatpush1.bf16.msra.mxu0 0
  %617 = vmatprep.subr.bf16.mxu0 0
  %618 = vmatpush1.bf16.msra.mxu0 0
  %619 = vmatprep.subr.bf16.mxu0 0
  %620 = vmatpush1.bf16.msra.mxu0 0
  %621 = vmatprep.subr.bf16.mxu0 0
  %622 = vmatpush1.bf16.msra.mxu0 0
  %623 = vmatprep.subr.bf16.mxu0 0
  %624 = vmatpush1.bf16.msra.mxu0 0
  %625 = vmatprep.mubr.bf16.mxu0 0
  %626 = vmatmul.mubr.bf16.gmra.mrb[0].mxu0 %v551
  %v627 = vpop.f32.mrb[0].mxu0
  %v628 = vadd.f32 0.0, %v627
  %v629 = vpop.f32.mrb[0].mxu0
  %v630 = vadd.f32 0.0, %v629
  %v631 = vpop.f32.mrb[0].mxu0
  %v632 = vpop.f32.mrb[0].mxu0
  %633 = vdwg.mxu0
  %v634 = vadd.f32 %v547, %v587
  %v635 = vadd.f32 %v548, %v589
  %v636 = vadd.f32 %v549, %v628
  %v637 = vadd.f32 %v550, %v630
  %v638 = vmul.f32 %v634, 0.5
  %v639 = vmul.f32 %v635, 0.5
  %v640 = vmul.f32 %v636, 0.5
  %v641 = vtanh.pop %v638
  %v642 = vtanh.pop %v639
  %v643 = vtanh.pop %v640
  %v644 = vadd.f32 %v641, 1.0
  %v645 = vadd.f32 %v642, 1.0
  %v646 = vadd.f32 %v643, 1.0
  %v647 = vmul.f32 %v644, 0.5
  %v648 = vmul.f32 %v645, 0.5
  %v649 = vmul.f32 %v646, 0.5
  %v650 = vtanh.pop %v637
  %v651 = vmul.f32 %v648, %v541
  %v652 = vmul.f32 %v647, %v650
  %v653 = vadd.f32 %v651, %v652
  %v654 = vtanh.pop %v653
  %v655 = vmul.f32 %v649, %v654
  %s656 = scalar_lea.vmem %s0, 64
  %v657 = vld [vmem:[%s656] sm:$0xff]
  %v658 = vld [vmem:[%s656 + $0x8] sm:$0xff]
  %v659 = vunpack.c.l.bf16 %v657
  %v660 = vunpack.c.h.bf16 %v657
  %v661 = vunpack.c.l.bf16 %v658
  %v662 = vunpack.c.h.bf16 %v658
  %v663 = vpack.c.bf16 %v655, %v655
  %664 = vmatprep.subr.bf16.mxu0 %v153
  %665 = vmatpush1.bf16.msra.mxu0 %v152
  %666 = vmatprep.subr.bf16.mxu0 %v157
  %667 = vmatpush1.bf16.msra.mxu0 %v156
  %668 = vmatprep.subr.bf16.mxu0 %v161
  %669 = vmatpush1.bf16.msra.mxu0 %v160
  %670 = vmatprep.subr.bf16.mxu0 %v165
  %671 = vmatpush1.bf16.msra.mxu0 %v164
  %672 = vmatprep.subr.bf16.mxu0 %v169
  %673 = vmatpush1.bf16.msra.mxu0 %v168
  %674 = vmatprep.subr.bf16.mxu0 %v173
  %675 = vmatpush1.bf16.msra.mxu0 %v172
  %676 = vmatprep.subr.bf16.mxu0 %v177
  %677 = vmatpush1.bf16.msra.mxu0 %v176
  %678 = vmatprep.subr.bf16.mxu0 %v181
  %679 = vmatpush1.bf16.msra.mxu0 %v180
  %680 = vmatprep.subr.bf16.mxu0 0
  %681 = vmatpush1.bf16.msra.mxu0 0
  %682 = vmatprep.subr.bf16.mxu0 0
  %683 = vmatpush1.bf16.msra.mxu0 0
  %684 = vmatprep.subr.bf16.mxu0 0
  %685 = vmatpush1.bf16.msra.mxu0 0
  %686 = vmatprep.subr.bf16.mxu0 0
  %687 = vmatpush1.bf16.msra.mxu0 0
  %688 = vmatprep.subr.bf16.mxu0 0
  %689 = vmatpush1.bf16.msra.mxu0 0
  %690 = vmatprep.subr.bf16.mxu0 0
  %691 = vmatpush1.bf16.msra.mxu0 0
  %692 = vmatprep.subr.bf16.mxu0 0
  %693 = vmatpush1.bf16.msra.mxu0 0
  %694 = vmatprep.subr.bf16.mxu0 0
  %695 = vmatpush1.bf16.msra.mxu0 0
  %696 = vmatprep.mubr.bf16.mxu0 0
  %697 = vmatmul.mubr.bf16.gmra.mrb[0].mxu0 %v663
  %v698 = vpop.f32.mrb[0].mxu0
  %v699 = vadd.f32 0.0, %v698
  %v700 = vpop.f32.mrb[0].mxu0
  %v701 = vadd.f32 0.0, %v700
  %v702 = vpop.f32.mrb[0].mxu0
  %v703 = vpop.f32.mrb[0].mxu0
  %704 = vdwg.mxu0
  %705 = vmatprep.subr.bf16.mxu0 %v155
  %706 = vmatpush1.bf16.msra.mxu0 %v154
  %707 = vmatprep.subr.bf16.mxu0 %v159
  %708 = vmatpush1.bf16.msra.mxu0 %v158
  %709 = vmatprep.subr.bf16.mxu0 %v163
  %710 = vmatpush1.bf16.msra.mxu0 %v162
  %711 = vmatprep.subr.bf16.mxu0 %v167
  %712 = vmatpush1.bf16.msra.mxu0 %v166
  %713 = vmatprep.subr.bf16.mxu0 %v171
  %714 = vmatpush1.bf16.msra.mxu0 %v170
  %715 = vmatprep.subr.bf16.mxu0 %v175
  %716 = vmatpush1.bf16.msra.mxu0 %v174
  %717 = vmatprep.subr.bf16.mxu0 %v179
  %718 = vmatpush1.bf16.msra.mxu0 %v178
  %719 = vmatprep.subr.bf16.mxu0 %v183
  %720 = vmatpush1.bf16.msra.mxu0 %v182
  %721 = vmatprep.subr.bf16.mxu0 0
  %722 = vmatpush1.bf16.msra.mxu0 0
  %723 = vmatprep.subr.bf16.mxu0 0
  %724 = vmatpush1.bf16.msra.mxu0 0
  %725 = vmatprep.subr.bf16.mxu0 0
  %726 = vmatpush1.bf16.msra.mxu0 0
  %727 = vmatprep.subr.bf16.mxu0 0
  %728 = vmatpush1.bf16.msra.mxu0 0
  %729 = vmatprep.subr.bf16.mxu0 0
  %730 = vmatpush1.bf16.msra.mxu0 0
  %731 = vmatprep.subr.bf16.mxu0 0
  %732 = vmatpush1.bf16.msra.mxu0 0
  %733 = vmatprep.subr.bf16.mxu0 0
  %734 = vmatpush1.bf16.msra.mxu0 0
  %735 = vmatprep.subr.bf16.mxu0 0
  %736 = vmatpush1.bf16.msra.mxu0 0
  %737 = vmatprep.mubr.bf16.mxu0 0
  %738 = vmatmul.mubr.bf16.gmra.mrb[0].mxu0 %v663
  %v739 = vpop.f32.mrb[0].mxu0
  %v740 = vadd.f32 0.0, %v739
  %v741 = vpop.f32.mrb[0].mxu0
  %v742 = vadd.f32 0.0, %v741
  %v743 = vpop.f32.mrb[0].mxu0
  %v744 = vpop.f32.mrb[0].mxu0
  %745 = vdwg.mxu0
  %v746 = vadd.f32 %v659, %v699
  %v747 = vadd.f32 %v660, %v701
  %v748 = vadd.f32 %v661, %v740
  %v749 = vadd.f32 %v662, %v742
  %v750 = vmul.f32 %v746, 0.5
  %v751 = vmul.f32 %v747, 0.5
  %v752 = vmul.f32 %v748, 0.5
  %v753 = vtanh.pop %v750
  %v754 = vtanh.pop %v751
  %v755 = vtanh.pop %v752
  %v756 = vadd.f32 %v753, 1.0
  %v757 = vadd.f32 %v754, 1.0
  %v758 = vadd.f32 %v755, 1.0
  %v759 = vmul.f32 %v756, 0.5
  %v760 = vmul.f32 %v757, 0.5
  %v761 = vmul.f32 %v758, 0.5
  %v762 = vtanh.pop %v749
  %v763 = vmul.f32 %v760, %v653
  %v764 = vmul.f32 %v759, %v762
  %v765 = vadd.f32 %v763, %v764
  %v766 = vtanh.pop %v765
  %v767 = vmul.f32 %v761, %v766
  %s768 = scalar_lea.vmem %s0, 80
  %v769 = vld [vmem:[%s768] sm:$0xff]
  %v770 = vld [vmem:[%s768 + $0x8] sm:$0xff]
  %v771 = vunpack.c.l.bf16 %v769
  %v772 = vunpack.c.h.bf16 %v769
  %v773 = vunpack.c.l.bf16 %v770
  %v774 = vunpack.c.h.bf16 %v770
  %v775 = vpack.c.bf16 %v767, %v767
  %776 = vmatprep.subr.bf16.mxu0 %v153
  %777 = vmatpush1.bf16.msra.mxu0 %v152
  %778 = vmatprep.subr.bf16.mxu0 %v157
  %779 = vmatpush1.bf16.msra.mxu0 %v156
  %780 = vmatprep.subr.bf16.mxu0 %v161
  %781 = vmatpush1.bf16.msra.mxu0 %v160
  %782 = vmatprep.subr.bf16.mxu0 %v165
  %783 = vmatpush1.bf16.msra.mxu0 %v164
  %784 = vmatprep.subr.bf16.mxu0 %v169
  %785 = vmatpush1.bf16.msra.mxu0 %v168
  %786 = vmatprep.subr.bf16.mxu0 %v173
  %787 = vmatpush1.bf16.msra.mxu0 %v172
  %788 = vmatprep.subr.bf16.mxu0 %v177
  %789 = vmatpush1.bf16.msra.mxu0 %v176
  %790 = vmatprep.subr.bf16.mxu0 %v181
  %791 = vmatpush1.bf16.msra.mxu0 %v180
  %792 = vmatprep.subr.bf16.mxu0 0
  %793 = vmatpush1.bf16.msra.mxu0 0
  %794 = vmatprep.subr.bf16.mxu0 0
  %795 = vmatpush1.bf16.msra.mxu0 0
  %796 = vmatprep.subr.bf16.mxu0 0
  %797 = vmatpush1.bf16.msra.mxu0 0
  %798 = vmatprep.subr.bf16.mxu0 0
  %799 = vmatpush1.bf16.msra.mxu0 0
  %800 = vmatprep.subr.bf16.mxu0 0
  %801 = vmatpush1.bf16.msra.mxu0 0
  %802 = vmatprep.subr.bf16.mxu0 0
  %803 = vmatpush1.bf16.msra.mxu0 0
  %804 = vmatprep.subr.bf16.mxu0 0
  %805 = vmatpush1.bf16.msra.mxu0 0
  %806 = vmatprep.subr.bf16.mxu0 0
  %807 = vmatpush1.bf16.msra.mxu0 0
  %808 = vmatprep.mubr.bf16.mxu0 0
  %809 = vmatmul.mubr.bf16.gmra.mrb[0].mxu0 %v775
  %v810 = vpop.f32.mrb[0].mxu0
  %v811 = vadd.f32 0.0, %v810
  %v812 = vpop.f32.mrb[0].mxu0
  %v813 = vadd.f32 0.0, %v812
  %v814 = vpop.f32.mrb[0].mxu0
  %v815 = vpop.f32.mrb[0].mxu0
  %816 = vdwg.mxu0
  %817 = vmatprep.subr.bf16.mxu0 %v155
  %818 = vmatpush1.bf16.msra.mxu0 %v154
  %819 = vmatprep.subr.bf16.mxu0 %v159
  %820 = vmatpush1.bf16.msra.mxu0 %v158
  %821 = vmatprep.subr.bf16.mxu0 %v163
  %822 = vmatpush1.bf16.msra.mxu0 %v162
  %823 = vmatprep.subr.bf16.mxu0 %v167
  %824 = vmatpush1.bf16.msra.mxu0 %v166
  %825 = vmatprep.subr.bf16.mxu0 %v171
  %826 = vmatpush1.bf16.msra.mxu0 %v170
  %827 = vmatprep.subr.bf16.mxu0 %v175
  %828 = vmatpush1.bf16.msra.mxu0 %v174
  %829 = vmatprep.subr.bf16.mxu0 %v179
  %830 = vmatpush1.bf16.msra.mxu0 %v178
  %831 = vmatprep.subr.bf16.mxu0 %v183
  %832 = vmatpush1.bf16.msra.mxu0 %v182
  %833 = vmatprep.subr.bf16.mxu0 0
  %834 = vmatpush1.bf16.msra.mxu0 0
  %835 = vmatprep.subr.bf16.mxu0 0
  %836 = vmatpush1.bf16.msra.mxu0 0
  %837 = vmatprep.subr.bf16.mxu0 0
  %838 = vmatpush1.bf16.msra.mxu0 0
  %839 = vmatprep.subr.bf16.mxu0 0
  %840 = vmatpush1.bf16.msra.mxu0 0
  %841 = vmatprep.subr.bf16.mxu0 0
  %842 = vmatpush1.bf16.msra.mxu0 0
  %843 = vmatprep.subr.bf16.mxu0 0
  %844 = vmatpush1.bf16.msra.mxu0 0
  %845 = vmatprep.subr.bf16.mxu0 0
  %846 = vmatpush1.bf16.msra.mxu0 0
  %847 = vmatprep.subr.bf16.mxu0 0
  %848 = vmatpush1.bf16.msra.mxu0 0
  %849 = vmatprep.mubr.bf16.mxu0 0
  %850 = vmatmul.mubr.bf16.gmra.mrb[0].mxu0 %v775
  %v851 = vpop.f32.mrb[0].mxu0
  %v852 = vadd.f32 0.0, %v851
  %v853 = vpop.f32.mrb[0].mxu0
  %v854 = vadd.f32 0.0, %v853
  %v855 = vpop.f32.mrb[0].mxu0
  %v856 = vpop.f32.mrb[0].mxu0
  %857 = vdwg.mxu0
  %v858 = vadd.f32 %v771, %v811
  %v859 = vadd.f32 %v772, %v813
  %v860 = vadd.f32 %v773, %v852
  %v861 = vadd.f32 %v774, %v854
  %v862 = vmul.f32 %v858, 0.5
  %v863 = vmul.f32 %v859, 0.5
  %v864 = vmul.f32 %v860, 0.5
  %v865 = vtanh.pop %v862
  %v866 = vtanh.pop %v863
  %v867 = vtanh.pop %v864
  %v868 = vadd.f32 %v865, 1.0
  %v869 = vadd.f32 %v866, 1.0
  %v870 = vadd.f32 %v867, 1.0
  %v871 = vmul.f32 %v868, 0.5
  %v872 = vmul.f32 %v869, 0.5
  %v873 = vmul.f32 %v870, 0.5
  %v874 = vtanh.pop %v861
  %v875 = vmul.f32 %v872, %v765
  %v876 = vmul.f32 %v871, %v874
  %v877 = vadd.f32 %v875, %v876
  %v878 = vtanh.pop %v877
  %v879 = vmul.f32 %v873, %v878
  %s880 = scalar_lea.vmem %s0, 96
  %v881 = vld [vmem:[%s880] sm:$0xff]
  %v882 = vld [vmem:[%s880 + $0x8] sm:$0xff]
  %v883 = vunpack.c.l.bf16 %v881
  %v884 = vunpack.c.h.bf16 %v881
  %v885 = vunpack.c.l.bf16 %v882
  %v886 = vunpack.c.h.bf16 %v882
  %v887 = vpack.c.bf16 %v879, %v879
  %888 = vmatprep.subr.bf16.mxu0 %v153
  %889 = vmatpush1.bf16.msra.mxu0 %v152
  %890 = vmatprep.subr.bf16.mxu0 %v157
  %891 = vmatpush1.bf16.msra.mxu0 %v156
  %892 = vmatprep.subr.bf16.mxu0 %v161
  %893 = vmatpush1.bf16.msra.mxu0 %v160
  %894 = vmatprep.subr.bf16.mxu0 %v165
  %895 = vmatpush1.bf16.msra.mxu0 %v164
  %896 = vmatprep.subr.bf16.mxu0 %v169
  %897 = vmatpush1.bf16.msra.mxu0 %v168
  %898 = vmatprep.subr.bf16.mxu0 %v173
  %899 = vmatpush1.bf16.msra.mxu0 %v172
  %900 = vmatprep.subr.bf16.mxu0 %v177
  %901 = vmatpush1.bf16.msra.mxu0 %v176
  %902 = vmatprep.subr.bf16.mxu0 %v181
  %903 = vmatpush1.bf16.msra.mxu0 %v180
  %904 = vmatprep.subr.bf16.mxu0 0
  %905 = vmatpush1.bf16.msra.mxu0 0
  %906 = vmatprep.subr.bf16.mxu0 0
  %907 = vmatpush1.bf16.msra.mxu0 0
  %908 = vmatprep.subr.bf16.mxu0 0
  %909 = vmatpush1.bf16.msra.mxu0 0
  %910 = vmatprep.subr.bf16.mxu0 0
  %911 = vmatpush1.bf16.msra.mxu0 0
  %912 = vmatprep.subr.bf16.mxu0 0
  %913 = vmatpush1.bf16.msra.mxu0 0
  %914 = vmatprep.subr.bf16.mxu0 0
  %915 = vmatpush1.bf16.msra.mxu0 0
  %916 = vmatprep.subr.bf16.mxu0 0
  %917 = vmatpush1.bf16.msra.mxu0 0
  %918 = vmatprep.subr.bf16.mxu0 0
  %919 = vmatpush1.bf16.msra.mxu0 0
  %920 = vmatprep.mubr.bf16.mxu0 0
  %921 = vmatmul.mubr.bf16.gmra.mrb[0].mxu0 %v887
  %v922 = vpop.f32.mrb[0].mxu0
  %v923 = vadd.f32 0.0, %v922
  %v924 = vpop.f32.mrb[0].mxu0
  %v925 = vadd.f32 0.0, %v924
  %v926 = vpop.f32.mrb[0].mxu0
  %v927 = vpop.f32.mrb[0].mxu0
  %928 = vdwg.mxu0
  %929 = vmatprep.subr.bf16.mxu0 %v155
  %930 = vmatpush1.bf16.msra.mxu0 %v154
  %931 = vmatprep.subr.bf16.mxu0 %v159
  %932 = vmatpush1.bf16.msra.mxu0 %v158
  %933 = vmatprep.subr.bf16.mxu0 %v163
  %934 = vmatpush1.bf16.msra.mxu0 %v162
  %935 = vmatprep.subr.bf16.mxu0 %v167
  %936 = vmatpush1.bf16.msra.mxu0 %v166
  %937 = vmatprep.subr.bf16.mxu0 %v171
  %938 = vmatpush1.bf16.msra.mxu0 %v170
  %939 = vmatprep.subr.bf16.mxu0 %v175
  %940 = vmatpush1.bf16.msra.mxu0 %v174
  %941 = vmatprep.subr.bf16.mxu0 %v179
  %942 = vmatpush1.bf16.msra.mxu0 %v178
  %943 = vmatprep.subr.bf16.mxu0 %v183
  %944 = vmatpush1.bf16.msra.mxu0 %v182
  %945 = vmatprep.subr.bf16.mxu0 0
  %946 = vmatpush1.bf16.msra.mxu0 0
  %947 = vmatprep.subr.bf16.mxu0 0
  %948 = vmatpush1.bf16.msra.mxu0 0
  %949 = vmatprep.subr.bf16.mxu0 0
  %950 = vmatpush1.bf16.msra.mxu0 0
  %951 = vmatprep.subr.bf16.mxu0 0
  %952 = vmatpush1.bf16.msra.mxu0 0
  %953 = vmatprep.subr.bf16.mxu0 0
  %954 = vmatpush1.bf16.msra.mxu0 0
  %955 = vmatprep.subr.bf16.mxu0 0
  %956 = vmatpush1.bf16.msra.mxu0 0
  %957 = vmatprep.subr.bf16.mxu0 0
  %958 = vmatpush1.bf16.msra.mxu0 0
  %959 = vmatprep.subr.bf16.mxu0 0
  %960 = vmatpush1.bf16.msra.mxu0 0
  %961 = vmatprep.mubr.bf16.mxu0 0
  %962 = vmatmul.mubr.bf16.gmra.mrb[0].mxu0 %v887
  %v963 = vpop.f32.mrb[0].mxu0
  %v964 = vadd.f32 0.0, %v963
  %v965 = vpop.f32.mrb[0].mxu0
  %v966 = vadd.f32 0.0, %v965
  %v967 = vpop.f32.mrb[0].mxu0
  %v968 = vpop.f32.mrb[0].mxu0
  %969 = vdwg.mxu0
  %v970 = vadd.f32 %v883, %v923
  %v971 = vadd.f32 %v884, %v925
  %v972 = vadd.f32 %v885, %v964
  %v973 = vadd.f32 %v886, %v966
  %v974 = vmul.f32 %v970, 0.5
  %v975 = vmul.f32 %v971, 0.5
  %v976 = vmul.f32 %v972, 0.5
  %v977 = vtanh.pop %v974
  %v978 = vtanh.pop %v975
  %v979 = vtanh.pop %v976
  %v980 = vadd.f32 %v977, 1.0
  %v981 = vadd.f32 %v978, 1.0
  %v982 = vadd.f32 %v979, 1.0
  %v983 = vmul.f32 %v980, 0.5
  %v984 = vmul.f32 %v981, 0.5
  %v985 = vmul.f32 %v982, 0.5
  %v986 = vtanh.pop %v973
  %v987 = vmul.f32 %v984, %v877
  %v988 = vmul.f32 %v983, %v986
  %v989 = vadd.f32 %v987, %v988
  %v990 = vtanh.pop %v989
  %v991 = vmul.f32 %v985, %v990
  %s992 = scalar_lea.vmem %s0, 112
  %v993 = vld [vmem:[%s992] sm:$0xff]
  %v994 = vld [vmem:[%s992 + $0x8] sm:$0xff]
  %v995 = vunpack.c.l.bf16 %v993
  %v996 = vunpack.c.h.bf16 %v993
  %v997 = vunpack.c.l.bf16 %v994
  %v998 = vunpack.c.h.bf16 %v994
  %v999 = vpack.c.bf16 %v991, %v991
  %1000 = vmatprep.subr.bf16.mxu0 %v153
  %1001 = vmatpush1.bf16.msra.mxu0 %v152
  %1002 = vmatprep.subr.bf16.mxu0 %v157
  %1003 = vmatpush1.bf16.msra.mxu0 %v156
  %1004 = vmatprep.subr.bf16.mxu0 %v161
  %1005 = vmatpush1.bf16.msra.mxu0 %v160
  %1006 = vmatprep.subr.bf16.mxu0 %v165
  %1007 = vmatpush1.bf16.msra.mxu0 %v164
  %1008 = vmatprep.subr.bf16.mxu0 %v169
  %1009 = vmatpush1.bf16.msra.mxu0 %v168
  %1010 = vmatprep.subr.bf16.mxu0 %v173
  %1011 = vmatpush1.bf16.msra.mxu0 %v172
  %1012 = vmatprep.subr.bf16.mxu0 %v177
  %1013 = vmatpush1.bf16.msra.mxu0 %v176
  %1014 = vmatprep.subr.bf16.mxu0 %v181
  %1015 = vmatpush1.bf16.msra.mxu0 %v180
  %1016 = vmatprep.subr.bf16.mxu0 0
  %1017 = vmatpush1.bf16.msra.mxu0 0
  %1018 = vmatprep.subr.bf16.mxu0 0
  %1019 = vmatpush1.bf16.msra.mxu0 0
  %1020 = vmatprep.subr.bf16.mxu0 0
  %1021 = vmatpush1.bf16.msra.mxu0 0
  %1022 = vmatprep.subr.bf16.mxu0 0
  %1023 = vmatpush1.bf16.msra.mxu0 0
  %1024 = vmatprep.subr.bf16.mxu0 0
  %1025 = vmatpush1.bf16.msra.mxu0 0
  %1026 = vmatprep.subr.bf16.mxu0 0
  %1027 = vmatpush1.bf16.msra.mxu0 0
  %1028 = vmatprep.subr.bf16.mxu0 0
  %1029 = vmatpush1.bf16.msra.mxu0 0
  %1030 = vmatprep.subr.bf16.mxu0 0
  %1031 = vmatpush1.bf16.msra.mxu0 0
  %1032 = vmatprep.mubr.bf16.mxu0 0
  %1033 = vmatmul.mubr.bf16.gmra.mrb[0].mxu0 %v999
  %v1034 = vpop.f32.mrb[0].mxu0
  %v1035 = vadd.f32 0.0, %v1034
  %v1036 = vpop.f32.mrb[0].mxu0
  %v1037 = vadd.f32 0.0, %v1036
  %v1038 = vpop.f32.mrb[0].mxu0
  %v1039 = vpop.f32.mrb[0].mxu0
  %1040 = vdwg.mxu0
  %1041 = vmatprep.subr.bf16.mxu0 %v155
  %1042 = vmatpush1.bf16.msra.mxu0 %v154
  %1043 = vmatprep.subr.bf16.mxu0 %v159
  %1044 = vmatpush1.bf16.msra.mxu0 %v158
  %1045 = vmatprep.subr.bf16.mxu0 %v163
  %1046 = vmatpush1.bf16.msra.mxu0 %v162
  %1047 = vmatprep.subr.bf16.mxu0 %v167
  %1048 = vmatpush1.bf16.msra.mxu0 %v166
  %1049 = vmatprep.subr.bf16.mxu0 %v171
  %1050 = vmatpush1.bf16.msra.mxu0 %v170
  %1051 = vmatprep.subr.bf16.mxu0 %v175
  %1052 = vmatpush1.bf16.msra.mxu0 %v174
  %1053 = vmatprep.subr.bf16.mxu0 %v179
  %1054 = vmatpush1.bf16.msra.mxu0 %v178
  %1055 = vmatprep.subr.bf16.mxu0 %v183
  %1056 = vmatpush1.bf16.msra.mxu0 %v182
  %1057 = vmatprep.subr.bf16.mxu0 0
  %1058 = vmatpush1.bf16.msra.mxu0 0
  %1059 = vmatprep.subr.bf16.mxu0 0
  %1060 = vmatpush1.bf16.msra.mxu0 0
  %1061 = vmatprep.subr.bf16.mxu0 0
  %1062 = vmatpush1.bf16.msra.mxu0 0
  %1063 = vmatprep.subr.bf16.mxu0 0
  %1064 = vmatpush1.bf16.msra.mxu0 0
  %1065 = vmatprep.subr.bf16.mxu0 0
  %1066 = vmatpush1.bf16.msra.mxu0 0
  %1067 = vmatprep.subr.bf16.mxu0 0
  %1068 = vmatpush1.bf16.msra.mxu0 0
  %1069 = vmatprep.subr.bf16.mxu0 0
  %1070 = vmatpush1.bf16.msra.mxu0 0
  %1071 = vmatprep.subr.bf16.mxu0 0
  %1072 = vmatpush1.bf16.msra.mxu0 0
  %1073 = vmatprep.mubr.bf16.mxu0 0
  %1074 = vmatmul.mubr.bf16.gmra.mrb[0].mxu0 %v999
  %v1075 = vpop.f32.mrb[0].mxu0
  %v1076 = vadd.f32 0.0, %v1075
  %v1077 = vpop.f32.mrb[0].mxu0
  %v1078 = vadd.f32 0.0, %v1077
  %v1079 = vpop.f32.mrb[0].mxu0
  %v1080 = vpop.f32.mrb[0].mxu0
  %1081 = vdwg.mxu0
  %v1082 = vadd.f32 %v995, %v1035
  %v1083 = vadd.f32 %v996, %v1037
  %v1084 = vadd.f32 %v997, %v1076
  %v1085 = vadd.f32 %v998, %v1078
  %v1086 = vmul.f32 %v1082, 0.5
  %v1087 = vmul.f32 %v1083, 0.5
  %v1088 = vmul.f32 %v1084, 0.5
  %v1089 = vtanh.pop %v1086
  %v1090 = vtanh.pop %v1087
  %v1091 = vtanh.pop %v1088
  %v1092 = vadd.f32 %v1089, 1.0
  %v1093 = vadd.f32 %v1090, 1.0
  %v1094 = vadd.f32 %v1091, 1.0
  %v1095 = vmul.f32 %v1092, 0.5
  %v1096 = vmul.f32 %v1093, 0.5
  %v1097 = vmul.f32 %v1094, 0.5
  %v1098 = vtanh.pop %v1085
  %v1099 = vmul.f32 %v1096, %v989
  %v1100 = vmul.f32 %v1095, %v1098
  %v1101 = vadd.f32 %v1099, %v1100
  %v1102 = vtanh.pop %v1101
  %v1103 = vmul.f32 %v1097, %v1102
  %v1104 = vmul.f32 %v1103, 0.5
  %vm1105 = vcmp.ge.f32.partialorder %v1104, 0.1
  %v1106 = vsel %vm1105, 1.0, 0.0
  %v1107 = vpack.c.bf16 %v1106, %v1106
  %v1108 = vld [vmem:[%s2] sm:$0xf]
  %v1109 = vld [vmem:[%s2 + $0x4] sm:$0xf]
  %v1110 = vld [vmem:[%s2 + $0x8] sm:$0xf]
  %v1111 = vld [vmem:[%s2 + $0xc] sm:$0xf]
  %v1112 = vld [vmem:[%s2 + $0x10] sm:$0xf]
  %v1113 = vld [vmem:[%s2 + $0x14] sm:$0xf]
  %v1114 = vld [vmem:[%s2 + $0x18] sm:$0xf]
  %v1115 = vld [vmem:[%s2 + $0x1c] sm:$0xf]
  %v1116 = vld [vmem:[%s2 + $0x20] sm:$0xf]
  %v1117 = vld [vmem:[%s2 + $0x24] sm:$0xf]
  %v1118 = vld [vmem:[%s2 + $0x28] sm:$0xf]
  %v1119 = vld [vmem:[%s2 + $0x2c] sm:$0xf]
  %v1120 = vld [vmem:[%s2 + $0x30] sm:$0xf]
  %v1121 = vld [vmem:[%s2 + $0x34] sm:$0xf]
  %v1122 = vld [vmem:[%s2 + $0x38] sm:$0xf]
  %v1123 = vld [vmem:[%s2 + $0x3c] sm:$0xf]
  %v1124 = vld [vmem:[%s3] sm:$0x1]
  %v1126 = vlaneseq
  %v1127 = vshrl.u32 %v1126, 7
  %v1128 = vsub.s32 0, %v1127
  %v1129 = vrot.slane %v1124, %v1128
  %v1147 = vunpack.c.l.b16 %v1108
  %v1148 = vunpack.c.l.b16 %v1109
  %v1149 = vunpack.c.l.b16 %v1110
  %v1150 = vunpack.c.l.b16 %v1111
  %v1151 = vunpack.c.l.b16 %v1112
  %v1152 = vunpack.c.l.b16 %v1113
  %v1153 = vunpack.c.l.b16 %v1114
  %v1154 = vunpack.c.l.b16 %v1115
  %v1155 = vunpack.c.l.b16 %v1116
  %v1156 = vunpack.c.l.b16 %v1117
  %v1157 = vunpack.c.l.b16 %v1118
  %v1158 = vunpack.c.l.b16 %v1119
  %v1159 = vunpack.c.l.b16 %v1120
  %v1160 = vunpack.c.l.b16 %v1121
  %v1161 = vunpack.c.l.b16 %v1122
  %v1162 = vunpack.c.l.b16 %v1123
  %v1163 = vpack.c.b16 %v1148, %v1147
  %v1164 = vpack.c.b16 %v1150, %v1149
  %v1165 = vpack.c.b16 %v1152, %v1151
  %v1166 = vpack.c.b16 %v1154, %v1153
  %v1167 = vpack.c.b16 %v1156, %v1155
  %v1168 = vpack.c.b16 %v1158, %v1157
  %v1169 = vpack.c.b16 %v1160, %v1159
  %v1170 = vpack.c.b16 %v1162, %v1161
  %1179 = vmatprep.subr.bf16.mxu0 0
  %1180 = vmatpush1.bf16.msra.mxu0 %v1163
  %1181 = vmatprep.subr.bf16.mxu0 0
  %1182 = vmatpush1.bf16.msra.mxu0 %v1164
  %1183 = vmatprep.subr.bf16.mxu0 0
  %1184 = vmatpush1.bf16.msra.mxu0 %v1165
  %1185 = vmatprep.subr.bf16.mxu0 0
  %1186 = vmatpush1.bf16.msra.mxu0 %v1166
  %1187 = vmatprep.subr.bf16.mxu0 0
  %1188 = vmatpush1.bf16.msra.mxu0 %v1167
  %1189 = vmatprep.subr.bf16.mxu0 0
  %1190 = vmatpush1.bf16.msra.mxu0 %v1168
  %1191 = vmatprep.subr.bf16.mxu0 0
  %1192 = vmatpush1.bf16.msra.mxu0 %v1169
  %1193 = vmatprep.subr.bf16.mxu0 0
  %1194 = vmatpush1.bf16.msra.mxu0 %v1170
  %1195 = vmatprep.subr.bf16.mxu0 0
  %1196 = vmatpush1.bf16.msra.mxu0 0
  %1197 = vmatprep.subr.bf16.mxu0 0
  %1198 = vmatpush1.bf16.msra.mxu0 0
  %1199 = vmatprep.subr.bf16.mxu0 0
  %1200 = vmatpush1.bf16.msra.mxu0 0
  %1201 = vmatprep.subr.bf16.mxu0 0
  %1202 = vmatpush1.bf16.msra.mxu0 0
  %1203 = vmatprep.subr.bf16.mxu0 0
  %1204 = vmatpush1.bf16.msra.mxu0 0
  %1205 = vmatprep.subr.bf16.mxu0 0
  %1206 = vmatpush1.bf16.msra.mxu0 0
  %1207 = vmatprep.subr.bf16.mxu0 0
  %1208 = vmatpush1.bf16.msra.mxu0 0
  %1209 = vmatprep.subr.bf16.mxu0 0
  %1210 = vmatpush1.bf16.msra.mxu0 0
  %1211 = vmatprep.mubr.bf16.mxu0 0
  %1212 = vmatmul.mubr.bf16.gmra.mrb[0].mxu0 %v1107
  %v1213 = vpop.f32.mrb[0].mxu0
  %v1214 = vadd.f32 %v1129, %v1213
  %v1215 = vpop.f32.mrb[0].mxu0
  %v1216 = vpop.f32.mrb[0].mxu0
  %v1217 = vpop.f32.mrb[0].mxu0
  %1218 = vdwg.mxu0
  %1219 = vst [vmem:[%s4] sm:$0xff] %v1214
  // Predicated region
  $region18: #{hybrid_lstm_forward.1} parent=0 // pred_check
    _
  $region19: #{hybrid_lstm_forward.1} parent=0 // pred_check_branch
    %1221 = sbr.rel (0) target = $region21
  $region20: #{hybrid_lstm_forward.1} parent=0 // pred_region
    _
  $region21: #{hybrid_lstm_forward.1} parent=0 // pred_fallthru
    _
  // Predicated region
  $region22: #{hybrid_lstm_forward.1} parent=0 // pred_check
    _
  $region23: #{hybrid_lstm_forward.1} parent=0 // pred_check_branch
    %1223 = sbr.rel (0) target = $region25
  $region24: #{hybrid_lstm_forward.1} parent=0 // pred_region
    _
  $region25: #{hybrid_lstm_forward.1} parent=0 // pred_fallthru
    _

</llo_original>
